<compile_context>
chip_gen: v7x
topology: tpu7x:2x2x1
jax: 0.10.0
libtpu: 0.0.40
codegen_flags: <defaults>
</compile_context>

<pallas_src>
import functools

import jax
import jax.numpy as jnp
from jax.experimental import pallas as pl
from jax.experimental.pallas import tpu as pltpu


def _round_up(x, m):
    return ((x + m - 1) // m) * m


def _tpu_tiling_params():
    """Returns (Cout tile width for the MXU, assumed physical VMEM bytes)."""
    try:
        kind = jax.devices()[0].device_kind.lower()
    except Exception:
        kind = ""
    if any(t in kind for t in ("v2", "v3", "v4", "v5")):
        return 128, 128 << 20          # v5e and older: 128-wide MXU, 128 MiB VMEM
    if "v6" in kind:
        return 256, 128 << 20          # v6e: 256-wide MXU, 128 MiB VMEM
    return 256, 64 << 20               # v7x / unknown: 256-wide MXU, 64 MiB VMEM


def _vmem_estimate(TH, HB, Wq, C2, TC, Kq, Wout):
    """Rough VMEM bytes for one grid step (double-buffered blocks + scratch)."""
    c2_lane = _round_up(C2, 128)                       # lane padding of x tiles
    W16 = _round_up(Wout, 16)
    x_blk = TH * Wq * c2_lane * 2
    h_blk = HB * Wq * c2_lane * 2
    w_blk = Kq * Kq * _round_up(C2, 16) * TC * 2
    b_blk = 8 * TC * 4
    o_blk = TH * _round_up(Wout, 8) * TC * 4
    scratch = (TH + HB) * Wq * c2_lane * 2
    live = TH * W16 * TC * 4 + TH * W16 * c2_lane * 2  # f32 accumulator + one LHS slice
    return 2 * (x_blk + h_blk + w_blk + b_blk + o_blk) + scratch + live


def _conv_bn_act_kernel(x_ref, xh_ref, w_ref, bias_ref, o_ref, xbuf):
    """One (TH rows, Wout cols, TC channels) output tile of conv + BN + SiLU.

    x_ref:    (1, TH, Wq, C2)    bf16  main input-row window
    xh_ref:   (1, HB, Wq, C2)    bf16  halo rows (rows TH .. TH+HB-1 of the window)
    w_ref:    (Kq, Kq, C2, TC)   bf16  weights with BN scale folded in
    bias_ref: (1, TC)            f32   folded BN bias
    o_ref:    (1, TH, Wout, TC)  f32
    xbuf:     (TH+HB, Wq, C2)    bf16  scratch: main + halo rows assembled
    """
    _, TH, Wout, TC = o_ref.shape
    Kq, _, C2, _ = w_ref.shape
    HB = xh_ref.shape[1]
    W16 = _round_up(Wout, 16)            # static; wrapper guarantees Wq >= Kq-1+W16

    # Assemble the overlapping row window once (cheap leading-dim copies).
    xbuf[0:TH, :, :] = x_ref[0]
    xbuf[TH:TH + HB, :, :] = xh_ref[0]

    acc = jnp.zeros((TH * W16, TC), jnp.float32)
    for qh in range(Kq):                 # row taps
        for qw in range(Kq):             # column taps (shift applied on bf16 LHS)
            lhs = xbuf[qh:qh + TH, qw:qw + W16, :].reshape(TH * W16, C2)
            acc = acc + jnp.dot(lhs, w_ref[qh, qw],
                                preferred_element_type=jnp.float32)

    y = acc.reshape(TH, W16, TC)[:, :Wout, :] + bias_ref[...]   # BN bias (f32)
    y = y * jax.nn.sigmoid(y)                                   # SiLU (EUP)
    o_ref[...] = y[None].astype(o_ref.dtype)


@functools.partial(jax.jit, static_argnames=("stride", "eps"))
def conv_bn_act(x_nchw, weight_oihw, gamma, beta, running_mean, running_var,
                *, stride=1, eps=1e-5):
    """Conv2d(groups=1, bias=False) + BatchNorm2d(eval) + SiLU.  NCHW in / NCHW out."""
    # TODO(synk): groups > 1 (grouped / depthwise conv) not implemented; groups=1 only.
    N, Cin, H, W = x_nchw.shape
    Cout, _, K, _ = weight_oihw.shape
    s = int(stride)
    pad = (K - 1) // 2
    Hp, Wp = H + 2 * pad, W + 2 * pad
    Hout = (Hp - K) // s + 1
    Wout = (Wp - K) // s + 1

    # ---- per-generation tiling / explicit VMEM budget ------------------------
    tc_gen, vmem_cap = _tpu_tiling_params()
    vmem_limit = min(int(vmem_cap * 0.75), vmem_cap - (8 << 20))
    vmem_budget = int(vmem_limit * 0.7)

    TC = min(tc_gen, _round_up(Cout, 128))
    Cout_p = _round_up(Cout, TC)
    n_c = Cout_p // TC

    # Stride folded away via space-to-depth: the kernel only ever sees a
    # stride-1 conv with Kq x Kq taps over C2 = Cin*s*s channels.
    Ke = _round_up(K, s)
    Kq = Ke // s
    C2 = Cin * s * s
    Hp_e = max(_round_up(Hp, s), (Hout - 1) * s + Ke)
    Wp_e = max(_round_up(Wp, s), (Wout - 1) * s + Ke)
    Wq0 = Wp_e // s

    HB = _round_up(max(Kq - 1, 1), 8)            # halo rows (Blocked -> multiple of 8)
    W16 = _round_up(Wout, 16)                    # padded column window (free reshapes)
    Wq_f = max(Wq0, Kq - 1 + W16)
    # TODO(synk): for very small Cin the C2 contraction underfills the MXU lanes;
    # a W-packed contraction layout would help but is not implemented.

    # TH: largest halo-aligned row tile that fits the VMEM budget.
    th_cap = max(HB, min(256, _round_up(Hout, HB)))
    TH = HB
    cand = HB
    while cand <= th_cap:
        if _vmem_estimate(cand, HB, Wq_f, C2, TC, Kq, Wout) <= vmem_budget:
            TH = cand
        else:
            break
        cand += HB
    # Megacore balance: keep >= 2 row tiles when the rest of the grid is tiny.
    if N * n_c < 4 and Hout > HB:
        TH = min(TH, max(HB, _round_up((Hout + 1) // 2, HB)))

    n_h = -(-Hout // TH)
    Hout_p = n_h * TH
    Hq_f = Hout_p + HB
    R = TH // HB

    # ---- grid order: keep the larger operand resident, stream the other ------
    act_img = Hq_f * Wq_f * C2 * 2               # bf16 activation bytes / image
    w_all = Kq * Kq * C2 * Cout_p * 2            # bf16 weight bytes (all taps)
    if n_c * act_img + w_all <= act_img + n_h * w_all:
        grid = (N, n_c, n_h)                     # h innermost: weights stay resident
        xmap = lambda n, c, h: (n, h, 0, 0)
        hmap = lambda n, c, h: (n, (h + 1) * R, 0, 0)
        wmap = lambda n, c, h: (0, 0, 0, c)
        bmap = lambda n, c, h: (0, c)
        omap = lambda n, c, h: (n, h, 0, c)
    else:
        grid = (N, n_h, n_c)                     # c innermost: activations stay resident
        xmap = lambda n, h, c: (n, h, 0, 0)
        hmap = lambda n, h, c: (n, (h + 1) * R, 0, 0)
        wmap = lambda n, h, c: (0, 0, 0, c)
        bmap = lambda n, h, c: (0, c)
        omap = lambda n, h, c: (n, h, 0, c)

    # ---- layout plumbing (bf16 from the start, single fused pad/reshape) -----
    x = jnp.transpose(x_nchw, (0, 2, 3, 1)).astype(jnp.bfloat16)       # NCHW -> NHWC
    Ht, Wt = Hq_f * s, Wq_f * s
    x = jnp.pad(x, ((0, 0), (pad, Ht - H - pad), (pad, Wt - W - pad), (0, 0)))
    if s == 1:
        x2 = x                                                          # (N, Hq_f, Wq_f, C2)
    else:
        x2 = x.reshape(N, Hq_f, s, Wq_f, s, Cin)
        x2 = x2.transpose(0, 1, 3, 2, 4, 5).reshape(N, Hq_f, Wq_f, C2)

    # Weights -> (Kq, Kq, C2, Cout_p) with the BN scale folded in (f32, then bf16).
    wt = jnp.transpose(weight_oihw, (2, 3, 1, 0)).astype(jnp.float32)   # (K, K, Cin, Cout)
    wt = jnp.pad(wt, ((0, Ke - K), (0, Ke - K), (0, 0), (0, 0)))
    wt = wt.reshape(Kq, s, Kq, s, Cin, Cout).transpose(0, 2, 1, 3, 4, 5)
    wt = wt.reshape(Kq, Kq, C2, Cout)
    inv_std = jax.lax.rsqrt(running_var.astype(jnp.float32) + eps)
    scale = gamma.astype(jnp.float32) * inv_std
    bias = beta.astype(jnp.float32) - running_mean.astype(jnp.float32) * scale
    wt = wt * scale[None, None, None, :]
    wt = jnp.pad(wt, ((0, 0), (0, 0), (0, 0), (0, Cout_p - Cout))).astype(jnp.bfloat16)
    bias_p = jnp.pad(bias, (0, Cout_p - Cout)).reshape(1, Cout_p)

    out = pl.pallas_call(
        _conv_bn_act_kernel,
        out_shape=jax.ShapeDtypeStruct((N, Hout_p, Wout, Cout_p), jnp.float32),
        grid_spec=pltpu.PrefetchScalarGridSpec(
            num_scalar_prefetch=0,
            grid=grid,
            in_specs=[
                pl.BlockSpec((1, TH, Wq_f, C2), xmap),     # main row window
                pl.BlockSpec((1, HB, Wq_f, C2), hmap),     # halo rows (same array)
                pl.BlockSpec((Kq, Kq, C2, TC), wmap),      # scale-folded weights
                pl.BlockSpec((1, TC), bmap),               # folded BN bias
            ],
            out_specs=pl.BlockSpec((1, TH, Wout, TC), omap),
            scratch_shapes=[pltpu.VMEM((TH + HB, Wq_f, C2), jnp.bfloat16)],
        ),
        compiler_params=pltpu.CompilerParams(
            dimension_semantics=("parallel", "parallel", "parallel"),
            vmem_limit_bytes=int(vmem_limit)),
    )(x2, x2, wt, bias_p)

    # Slice + relayout back to NCHW in one fused op (module returns NCHW f32).
    # TODO(synk): keep NHWC end-to-end across layers to avoid this transpose.
    return jnp.transpose(out[:, :Hout, :, :Cout], (0, 3, 1, 2))


def _reference(x, w, gamma, beta, mean, var, stride, eps):
    # Pure-JAX reference: conv (bf16 operands, f32 accumulation) + BN(eval) + SiLU.
    K = w.shape[2]
    pad = (K - 1) // 2
    y = jax.lax.conv_general_dilated(
        x.astype(jnp.bfloat16), w.astype(jnp.bfloat16),
        window_strides=(stride, stride),
        padding=[(pad, pad), (pad, pad)],
        dimension_numbers=("NCHW", "OIHW", "NCHW"),
        preferred_element_type=jnp.float32)
    inv_std = 1.0 / jnp.sqrt(var + eps)
    y = (y - mean[None, :, None, None]) * (gamma * inv_std)[None, :, None, None] \
        + beta[None, :, None, None]
    return y * jax.nn.sigmoid(y)


if __name__ == "__main__":
    key = jax.random.PRNGKey(0)
    eps = 1e-5
    configs = [
        # (N, Cin, Cout, H, W, K, stride)
        (2, 4, 8, 16, 16, 3, 1),     # ConvBNAct defaults
        (2, 4, 8, 16, 16, 3, 2),     # strided conv (space-to-depth path)
        (1, 5, 130, 9, 9, 3, 1),     # odd sizes: Cout tiling + H/W padding paths
    ]
    for (N, Cin, Cout, H, W, K, stride) in configs:
        key, kx, kw, kg, kb, km, kv = jax.random.split(key, 7)
        x = jax.random.normal(kx, (N, Cin, H, W), jnp.float32)
        weight = jax.random.normal(kw, (Cout, Cin, K, K), jnp.float32) * 0.1
        gamma = 1.0 + 0.1 * jax.random.normal(kg, (Cout,), jnp.float32)
        beta = 0.1 * jax.random.normal(kb, (Cout,), jnp.float32)
        running_mean = 0.1 * jax.random.normal(km, (Cout,), jnp.float32)
        running_var = jnp.abs(jax.random.normal(kv, (Cout,), jnp.float32)) + 0.5

        out = conv_bn_act(x, weight, gamma, beta, running_mean, running_var,
                          stride=stride, eps=eps)
        out = jax.block_until_ready(out)

        ref = _reference(x, weight, gamma, beta, running_mean, running_var,
                         stride, eps)
        pad = (K - 1) // 2
        Hout = (H + 2 * pad - K) // stride + 1
        Wout = (W + 2 * pad - K) // stride + 1
        assert out.shape == (N, Cout, Hout, Wout), out.shape
        assert jnp.allclose(out, ref, atol=3e-2, rtol=3e-2), (
            f"mismatch vs reference for config {(N, Cin, Cout, H, W, K, stride)}; "
            f"max abs err = {jnp.max(jnp.abs(out - ref))}")
    print("KERNEL_OK")
</pallas_src>

<mosaic_0001>
module attributes {stable_mosaic.version = 11 : i64} {
  func.func @_conv_bn_act_kernel(%arg0: i32, %arg1: i32, %arg2: i32, %arg3: memref<1x8x18x4xbf16, #tpu.memory_space<vmem>>, %arg4: memref<1x8x18x4xbf16, #tpu.memory_space<vmem>>, %arg5: memref<3x3x4x128xbf16, #tpu.memory_space<vmem>>, %arg6: memref<1x128xf32, #tpu.memory_space<vmem>>, %arg7: memref<1x8x16x128xf32, #tpu.memory_space<vmem>>, %arg8: memref<16x18x4xbf16, #tpu.memory_space<vmem>>) attributes {dimension_semantics = [#tpu.dimension_semantics<parallel>, #tpu.dimension_semantics<parallel>, #tpu.dimension_semantics<parallel>], iteration_bounds = array<i64: 2, 1, 2>, scalar_prefetch = 0 : i64, scratch_operands = 1 : i64, tpu.core_type = #tpu.core_type<tc>, window_params = [{transform_indices = @transform_0, window_bounds = array<i64: 1, 8, 18, 4>}, {transform_indices = @transform_1, window_bounds = array<i64: 1, 8, 18, 4>}, {transform_indices = @transform_2, window_bounds = array<i64: 3, 3, 4, 128>}, {transform_indices = @transform_3, window_bounds = array<i64: 1, 128>}, {transform_indices = @transform_4, window_bounds = array<i64: 1, 8, 16, 128>}]} {
    %c0 = arith.constant 0 : index
    %c0_0 = arith.constant 0 : index
    %c0_1 = arith.constant 0 : index
    %c0_2 = arith.constant 0 : index
    %0 = vector.load %arg3[%c0, %c0_0, %c0_1, %c0_2] : memref<1x8x18x4xbf16, #tpu.memory_space<vmem>>, vector<1x8x18x4xbf16>
    %1 = vector.shape_cast %0 : vector<1x8x18x4xbf16> to vector<8x18x4xbf16>
    %c0_3 = arith.constant 0 : index
    %c0_4 = arith.constant 0 : index
    %c0_5 = arith.constant 0 : index
    %2 = vector.load %arg8[%c0_3, %c0_4, %c0_5] : memref<16x18x4xbf16, #tpu.memory_space<vmem>>, vector<8x18x4xbf16>
    tpu.vector_store %arg8[%c0_3, %c0_4, %c0_5], %1 {strides = array<i32>} : memref<16x18x4xbf16, #tpu.memory_space<vmem>>, vector<8x18x4xbf16>,
    %c0_6 = arith.constant 0 : index
    %c0_7 = arith.constant 0 : index
    %c0_8 = arith.constant 0 : index
    %c0_9 = arith.constant 0 : index
    %3 = vector.load %arg4[%c0_6, %c0_7, %c0_8, %c0_9] : memref<1x8x18x4xbf16, #tpu.memory_space<vmem>>, vector<1x8x18x4xbf16>
    %4 = vector.shape_cast %3 : vector<1x8x18x4xbf16> to vector<8x18x4xbf16>
    %c8 = arith.constant 8 : index
    %c0_10 = arith.constant 0 : index
    %c0_11 = arith.constant 0 : index
    %5 = vector.load %arg8[%c8, %c0_10, %c0_11] : memref<16x18x4xbf16, #tpu.memory_space<vmem>>, vector<8x18x4xbf16>
    tpu.vector_store %arg8[%c8, %c0_10, %c0_11], %4 {strides = array<i32>} : memref<16x18x4xbf16, #tpu.memory_space<vmem>>, vector<8x18x4xbf16>,
    %cst = arith.constant 0.000000e+00 : f32
    %6 = vector.broadcast %cst : f32 to vector<128x128xf32>
    %c0_12 = arith.constant 0 : index
    %c0_13 = arith.constant 0 : index
    %c0_14 = arith.constant 0 : index
    %7 = vector.load %arg8[%c0_12, %c0_13, %c0_14] : memref<16x18x4xbf16, #tpu.memory_space<vmem>>, vector<8x16x4xbf16>
    %8 = vector.shape_cast %7 : vector<8x16x4xbf16> to vector<128x4xbf16>
    %c0_15 = arith.constant 0 : index
    %c0_16 = arith.constant 0 : index
    %c0_17 = arith.constant 0 : index
    %c0_18 = arith.constant 0 : index
    %9 = vector.load %arg5[%c0_15, %c0_16, %c0_17, %c0_18] : memref<3x3x4x128xbf16, #tpu.memory_space<vmem>>, vector<1x1x4x128xbf16>
    %10 = vector.shape_cast %9 : vector<1x1x4x128xbf16> to vector<4x128xbf16>
    %cst_19 = arith.constant dense<0.000000e+00> : vector<128x128xf32>
    %11 = tpu.matmul %8, %10, %cst_19 {dimension_numbers = #tpu.dot_dimension_numbers<[1], [0], [0], [1], [0, 0, 1, 1], [], []>} : vector<128x4xbf16>, vector<4x128xbf16>, vector<128x128xf32> -> vector<128x128xf32>
    %12 = arith.addf %6, %11 : vector<128x128xf32>
    %c0_20 = arith.constant 0 : index
    %c1 = arith.constant 1 : index
    %c0_21 = arith.constant 0 : index
    %13 = vector.load %arg8[%c0_20, %c1, %c0_21] : memref<16x18x4xbf16, #tpu.memory_space<vmem>>, vector<8x16x4xbf16>
    %14 = vector.shape_cast %13 : vector<8x16x4xbf16> to vector<128x4xbf16>
    %c0_22 = arith.constant 0 : index
    %c1_23 = arith.constant 1 : index
    %c0_24 = arith.constant 0 : index
    %c0_25 = arith.constant 0 : index
    %15 = vector.load %arg5[%c0_22, %c1_23, %c0_24, %c0_25] : memref<3x3x4x128xbf16, #tpu.memory_space<vmem>>, vector<1x1x4x128xbf16>
    %16 = vector.shape_cast %15 : vector<1x1x4x128xbf16> to vector<4x128xbf16>
    %cst_26 = arith.constant dense<0.000000e+00> : vector<128x128xf32>
    %17 = tpu.matmul %14, %16, %cst_26 {dimension_numbers = #tpu.dot_dimension_numbers<[1], [0], [0], [1], [0, 0, 1, 1], [], []>} : vector<128x4xbf16>, vector<4x128xbf16>, vector<128x128xf32> -> vector<128x128xf32>
    %18 = arith.addf %12, %17 : vector<128x128xf32>
    %c0_27 = arith.constant 0 : index
    %c2 = arith.constant 2 : index
    %c0_28 = arith.constant 0 : index
    %19 = vector.load %arg8[%c0_27, %c2, %c0_28] : memref<16x18x4xbf16, #tpu.memory_space<vmem>>, vector<8x16x4xbf16>
    %20 = vector.shape_cast %19 : vector<8x16x4xbf16> to vector<128x4xbf16>
    %c0_29 = arith.constant 0 : index
    %c2_30 = arith.constant 2 : index
    %c0_31 = arith.constant 0 : index
    %c0_32 = arith.constant 0 : index
    %21 = vector.load %arg5[%c0_29, %c2_30, %c0_31, %c0_32] : memref<3x3x4x128xbf16, #tpu.memory_space<vmem>>, vector<1x1x4x128xbf16>
    %22 = vector.shape_cast %21 : vector<1x1x4x128xbf16> to vector<4x128xbf16>
    %cst_33 = arith.constant dense<0.000000e+00> : vector<128x128xf32>
    %23 = tpu.matmul %20, %22, %cst_33 {dimension_numbers = #tpu.dot_dimension_numbers<[1], [0], [0], [1], [0, 0, 1, 1], [], []>} : vector<128x4xbf16>, vector<4x128xbf16>, vector<128x128xf32> -> vector<128x128xf32>
    %24 = arith.addf %18, %23 : vector<128x128xf32>
    %c1_34 = arith.constant 1 : index
    %c0_35 = arith.constant 0 : index
    %c0_36 = arith.constant 0 : index
    %25 = vector.load %arg8[%c1_34, %c0_35, %c0_36] : memref<16x18x4xbf16, #tpu.memory_space<vmem>>, vector<8x16x4xbf16>
    %26 = vector.shape_cast %25 : vector<8x16x4xbf16> to vector<128x4xbf16>
    %c1_37 = arith.constant 1 : index
    %c0_38 = arith.constant 0 : index
    %c0_39 = arith.constant 0 : index
    %c0_40 = arith.constant 0 : index
    %27 = vector.load %arg5[%c1_37, %c0_38, %c0_39, %c0_40] : memref<3x3x4x128xbf16, #tpu.memory_space<vmem>>, vector<1x1x4x128xbf16>
    %28 = vector.shape_cast %27 : vector<1x1x4x128xbf16> to vector<4x128xbf16>
    %cst_41 = arith.constant dense<0.000000e+00> : vector<128x128xf32>
    %29 = tpu.matmul %26, %28, %cst_41 {dimension_numbers = #tpu.dot_dimension_numbers<[1], [0], [0], [1], [0, 0, 1, 1], [], []>} : vector<128x4xbf16>, vector<4x128xbf16>, vector<128x128xf32> -> vector<128x128xf32>
    %30 = arith.addf %24, %29 : vector<128x128xf32>
    %c1_42 = arith.constant 1 : index
    %c1_43 = arith.constant 1 : index
    %c0_44 = arith.constant 0 : index
    %31 = vector.load %arg8[%c1_42, %c1_43, %c0_44] : memref<16x18x4xbf16, #tpu.memory_space<vmem>>, vector<8x16x4xbf16>
    %32 = vector.shape_cast %31 : vector<8x16x4xbf16> to vector<128x4xbf16>
    %c1_45 = arith.constant 1 : index
    %c1_46 = arith.constant 1 : index
    %c0_47 = arith.constant 0 : index
    %c0_48 = arith.constant 0 : index
    %33 = vector.load %arg5[%c1_45, %c1_46, %c0_47, %c0_48] : memref<3x3x4x128xbf16, #tpu.memory_space<vmem>>, vector<1x1x4x128xbf16>
    %34 = vector.shape_cast %33 : vector<1x1x4x128xbf16> to vector<4x128xbf16>
    %cst_49 = arith.constant dense<0.000000e+00> : vector<128x128xf32>
    %35 = tpu.matmul %32, %34, %cst_49 {dimension_numbers = #tpu.dot_dimension_numbers<[1], [0], [0], [1], [0, 0, 1, 1], [], []>} : vector<128x4xbf16>, vector<4x128xbf16>, vector<128x128xf32> -> vector<128x128xf32>
    %36 = arith.addf %30, %35 : vector<128x128xf32>
    %c1_50 = arith.constant 1 : index
    %c2_51 = arith.constant 2 : index
    %c0_52 = arith.constant 0 : index
    %37 = vector.load %arg8[%c1_50, %c2_51, %c0_52] : memref<16x18x4xbf16, #tpu.memory_space<vmem>>, vector<8x16x4xbf16>
    %38 = vector.shape_cast %37 : vector<8x16x4xbf16> to vector<128x4xbf16>
    %c1_53 = arith.constant 1 : index
    %c2_54 = arith.constant 2 : index
    %c0_55 = arith.constant 0 : index
    %c0_56 = arith.constant 0 : index
    %39 = vector.load %arg5[%c1_53, %c2_54, %c0_55, %c0_56] : memref<3x3x4x128xbf16, #tpu.memory_space<vmem>>, vector<1x1x4x128xbf16>
    %40 = vector.shape_cast %39 : vector<1x1x4x128xbf16> to vector<4x128xbf16>
    %cst_57 = arith.constant dense<0.000000e+00> : vector<128x128xf32>
    %41 = tpu.matmul %38, %40, %cst_57 {dimension_numbers = #tpu.dot_dimension_numbers<[1], [0], [0], [1], [0, 0, 1, 1], [], []>} : vector<128x4xbf16>, vector<4x128xbf16>, vector<128x128xf32> -> vector<128x128xf32>
    %42 = arith.addf %36, %41 : vector<128x128xf32>
    %c2_58 = arith.constant 2 : index
    %c0_59 = arith.constant 0 : index
    %c0_60 = arith.constant 0 : index
    %43 = vector.load %arg8[%c2_58, %c0_59, %c0_60] : memref<16x18x4xbf16, #tpu.memory_space<vmem>>, vector<8x16x4xbf16>
    %44 = vector.shape_cast %43 : vector<8x16x4xbf16> to vector<128x4xbf16>
    %c2_61 = arith.constant 2 : index
    %c0_62 = arith.constant 0 : index
    %c0_63 = arith.constant 0 : index
    %c0_64 = arith.constant 0 : index
    %45 = vector.load %arg5[%c2_61, %c0_62, %c0_63, %c0_64] : memref<3x3x4x128xbf16, #tpu.memory_space<vmem>>, vector<1x1x4x128xbf16>
    %46 = vector.shape_cast %45 : vector<1x1x4x128xbf16> to vector<4x128xbf16>
    %cst_65 = arith.constant dense<0.000000e+00> : vector<128x128xf32>
    %47 = tpu.matmul %44, %46, %cst_65 {dimension_numbers = #tpu.dot_dimension_numbers<[1], [0], [0], [1], [0, 0, 1, 1], [], []>} : vector<128x4xbf16>, vector<4x128xbf16>, vector<128x128xf32> -> vector<128x128xf32>
    %48 = arith.addf %42, %47 : vector<128x128xf32>
    %c2_66 = arith.constant 2 : index
    %c1_67 = arith.constant 1 : index
    %c0_68 = arith.constant 0 : index
    %49 = vector.load %arg8[%c2_66, %c1_67, %c0_68] : memref<16x18x4xbf16, #tpu.memory_space<vmem>>, vector<8x16x4xbf16>
    %50 = vector.shape_cast %49 : vector<8x16x4xbf16> to vector<128x4xbf16>
    %c2_69 = arith.constant 2 : index
    %c1_70 = arith.constant 1 : index
    %c0_71 = arith.constant 0 : index
    %c0_72 = arith.constant 0 : index
    %51 = vector.load %arg5[%c2_69, %c1_70, %c0_71, %c0_72] : memref<3x3x4x128xbf16, #tpu.memory_space<vmem>>, vector<1x1x4x128xbf16>
    %52 = vector.shape_cast %51 : vector<1x1x4x128xbf16> to vector<4x128xbf16>
    %cst_73 = arith.constant dense<0.000000e+00> : vector<128x128xf32>
    %53 = tpu.matmul %50, %52, %cst_73 {dimension_numbers = #tpu.dot_dimension_numbers<[1], [0], [0], [1], [0, 0, 1, 1], [], []>} : vector<128x4xbf16>, vector<4x128xbf16>, vector<128x128xf32> -> vector<128x128xf32>
    %54 = arith.addf %48, %53 : vector<128x128xf32>
    %c2_74 = arith.constant 2 : index
    %c2_75 = arith.constant 2 : index
    %c0_76 = arith.constant 0 : index
    %55 = vector.load %arg8[%c2_74, %c2_75, %c0_76] : memref<16x18x4xbf16, #tpu.memory_space<vmem>>, vector<8x16x4xbf16>
    %56 = vector.shape_cast %55 : vector<8x16x4xbf16> to vector<128x4xbf16>
    %c2_77 = arith.constant 2 : index
    %c2_78 = arith.constant 2 : index
    %c0_79 = arith.constant 0 : index
    %c0_80 = arith.constant 0 : index
    %57 = vector.load %arg5[%c2_77, %c2_78, %c0_79, %c0_80] : memref<3x3x4x128xbf16, #tpu.memory_space<vmem>>, vector<1x1x4x128xbf16>
    %58 = vector.shape_cast %57 : vector<1x1x4x128xbf16> to vector<4x128xbf16>
    %cst_81 = arith.constant dense<0.000000e+00> : vector<128x128xf32>
    %59 = tpu.matmul %56, %58, %cst_81 {dimension_numbers = #tpu.dot_dimension_numbers<[1], [0], [0], [1], [0, 0, 1, 1], [], []>} : vector<128x4xbf16>, vector<4x128xbf16>, vector<128x128xf32> -> vector<128x128xf32>
    %60 = arith.addf %54, %59 : vector<128x128xf32>
    %61 = vector.shape_cast %60 : vector<128x128xf32> to vector<8x16x128xf32>
    %c0_82 = arith.constant 0 : index
    %c0_83 = arith.constant 0 : index
    %62 = vector.load %arg6[%c0_82, %c0_83] : memref<1x128xf32, #tpu.memory_space<vmem>>, vector<1x128xf32>
    %63 = vector.shape_cast %62 : vector<1x128xf32> to vector<1x1x128xf32>
    %64 = vector.broadcast %63 : vector<1x1x128xf32> to vector<8x16x128xf32>
    %65 = arith.addf %61, %64 : vector<8x16x128xf32>
    %66 = arith.negf %65 : vector<8x16x128xf32>
    %67 = math.exp %66 : vector<8x16x128xf32>
    %cst_84 = arith.constant 1.000000e+00 : f32
    %68 = vector.broadcast %cst_84 : f32 to vector<8x16x128xf32>
    %69 = arith.addf %68, %67 : vector<8x16x128xf32>
    %70 = arith.divf %68, %69 : vector<8x16x128xf32>
    %71 = arith.mulf %65, %70 : vector<8x16x128xf32>
    %72 = vector.shape_cast %71 : vector<8x16x128xf32> to vector<1x8x16x128xf32>
    %c0_85 = arith.constant 0 : index
    %c0_86 = arith.constant 0 : index
    %c0_87 = arith.constant 0 : index
    %c0_88 = arith.constant 0 : index
    %73 = vector.load %arg7[%c0_85, %c0_86, %c0_87, %c0_88] : memref<1x8x16x128xf32, #tpu.memory_space<vmem>>, vector<1x8x16x128xf32>
    tpu.vector_store %arg7[%c0_85, %c0_86, %c0_87, %c0_88], %72 {strides = array<i32>} : memref<1x8x16x128xf32, #tpu.memory_space<vmem>>, vector<1x8x16x128xf32>,
    return
  }
  func.func @transform_0(%arg0: i32, %arg1: i32, %arg2: i32) -> (i32, i32, i32, i32) {
    %c0_i32 = arith.constant 0 : i32
    %c0_i32_0 = arith.constant 0 : i32
    %c0_i32_1 = arith.constant 0 : i32
    return %arg0, %arg2, %c0_i32, %c0_i32_0 : i32, i32, i32, i32
  }
  func.func @transform_1(%arg0: i32, %arg1: i32, %arg2: i32) -> (i32, i32, i32, i32) {
    %c1_i32 = arith.constant 1 : i32
    %0 = arith.addi %arg2, %c1_i32 : i32
    %c1_i32_0 = arith.constant 1 : i32
    %1 = arith.muli %0, %c1_i32_0 : i32
    %c0_i32 = arith.constant 0 : i32
    %c0_i32_1 = arith.constant 0 : i32
    %c0_i32_2 = arith.constant 0 : i32
    return %arg0, %1, %c0_i32, %c0_i32_1 : i32, i32, i32, i32
  }
  func.func @transform_2(%arg0: i32, %arg1: i32, %arg2: i32) -> (i32, i32, i32, i32) {
    %c0_i32 = arith.constant 0 : i32
    %c0_i32_0 = arith.constant 0 : i32
    %c0_i32_1 = arith.constant 0 : i32
    %c0_i32_2 = arith.constant 0 : i32
    return %c0_i32, %c0_i32_0, %c0_i32_1, %arg1 : i32, i32, i32, i32
  }
  func.func @transform_3(%arg0: i32, %arg1: i32, %arg2: i32) -> (i32, i32) {
    %c0_i32 = arith.constant 0 : i32
    %c0_i32_0 = arith.constant 0 : i32
    return %c0_i32, %arg1 : i32, i32
  }
  func.func @transform_4(%arg0: i32, %arg1: i32, %arg2: i32) -> (i32, i32, i32, i32) {
    %c0_i32 = arith.constant 0 : i32
    %c0_i32_0 = arith.constant 0 : i32
    return %arg0, %arg2, %c0_i32, %arg1 : i32, i32, i32, i32
  }
}

</mosaic_0001>

<llo_original>
// kernel: conv_bn_act.1
$region0: #{conv_bn_act.1}
  #allocation0 [shape = 'u32[]', space=smem, size = 0x4, offset = 0x4, fixed_abs, tag = 'smem constant byte address 0x4 - core index']
  #allocation1 [shape = 'u32[144,128]{1,0:T(1,128)}', space=vmem, size = 0x12000, scoped, tag = 'internal scratch']
  #allocation2 [shape = 'bf16[16,18,4]{2,1,0:T(8,128)(2,1)}', space=vmem, size = 0x18000, scoped, tag = 'scratch operand']
  %s0 = inlined_call_operand.vmem [shape: bf16[2,24,18,4], index: 0, kind: input, shape index: {}, may-alias: {0,1}]
  %s1 = inlined_call_operand.vmem [shape: bf16[2,24,18,4], index: 1, kind: input, shape index: {}, may-alias: {0,1}]
  %s2 = inlined_call_operand.vmem [shape: bf16[3,3,4,128], index: 2, kind: input, shape index: {}]
  %s3 = inlined_call_operand.vmem [shape: f32[1,128], index: 3, kind: input, shape index: {}]
  %s4 = inlined_call_operand.vmem [shape: f32[2,16,16,128], index: 4, kind: output, shape index: {}]
  %s5 = sld [smem:[#allocation0]]
  $region49: #{conv_bn_act.1} parent=0
    _
  %s7 = ssub.s32 1, %s5
  %s8 = scalar_select 0, %s7, %s5
  loop: start=0, step=1, limit=6
  $region2: #{conv_bn_act.1} parent=0 // loop_pre_header
    _
  $region3: #{conv_bn_act.1} parent=0 // loop_header
    %s10 = sphi 0, %s14
    %p11 = scmp.ge.s32.totalorder %s10, 6
    %s17 = sphi 0, %s36
    %s18 = sphi 0, %s32
    %s19 = sphi 0, %s28
    %s20 = sphi 0, %s17
    %s21 = sphi 0, %s18
    %s22 = sphi 0, %s19
    %s23 = sphi 0, %s20
    %s24 = sphi 0, %s21
    %s25 = sphi 0, %s22
    %s41 = sphi 0, %s43
    %s44 = sphi 0, %s41
    %s45 = sphi 0, %s44
    %s61 = sphi 0, %s45
    %s71 = sphi 0, %s73
    %s74 = sphi 0, %s71
    %s75 = sphi 0, %s74
    %s91 = sphi 0, %s75
    %s97 = sphi 0, %s99
    %s100 = sphi 0, %s97
    %s101 = sphi 0, %s100
    %s117 = sphi 0, %s101
    %s123 = sphi 0, %s125
    %s126 = sphi 0, %s123
    %s127 = sphi 0, %s126
    %s143 = sphi 0, %s127
    %s153 = sphi 0, %s155
    %s156 = sphi 0, %s153
    %s157 = sphi 0, %s156
    %s173 = sphi 0, %s157
  $region4: #{conv_bn_act.1} parent=0 // loop_header_branch
    %13 = sbr.rel (%p11) target = $region8
  $region5: #{conv_bn_act.1} parent=0 // loop_body
    %s15 = ssub.s32 %s10, 1
    %s16 = ssub.s32 %s10, 2
    %s26 = sadd.s32 1, %s19
    %p27 = scmp.ge.s32.totalorder %s26, 2
    %s28 = scalar_select %p27, 0, %s26
    %s29 = sadd.s32 1, %s18
    %s30 = scalar_select %p27, %s29, %s18
    %p31 = scmp.ge.s32.totalorder %s30, 1
    %s32 = scalar_select %p31, 0, %s30
    %s33 = sadd.s32 1, %s17
    %s34 = scalar_select %p31, %s33, %s17
    %p35 = scmp.ge.s32.totalorder %s34, 2
    %s36 = scalar_select %p35, 0, %s34
    %s37 = ssub.s32 %s17, %s36
    %s38 = ssub.s32 %s19, %s28
    %s39 = sor.u32 %s37, %s38
    %p40 = scmp.eq.s32.totalorder %s39, 0
    %s42 = sadd.s32 %s41, 1
    %s43 = scalar_select %p40, %s41, %s42
    %p46 = pneg %p40
    %p47 = scmp.eq.s32.totalorder %s10, 3
    %p48 = por %p46, %p47
    %p49 = scmp.ne.s32.totalorder %s41, %s44
    %p50 = scmp.eq.s32.totalorder %s10, 0
    %p51 = por %p49, %p50
    %p52 = scmp.ne.s32.totalorder %s41, %s44
    %p53 = scmp.eq.s32.totalorder %s15, 3
    %p54 = por %p52, %p53
    %p55 = scmp.ne.s32.totalorder %s44, %s45
    %p56 = scmp.eq.s32.totalorder %s15, 0
    %p57 = por %p55, %p56
    %p58 = scmp.ne.s32.totalorder %s44, %s45
    %p59 = scmp.eq.s32.totalorder %s16, 3
    %p60 = por %p58, %p59
    %p62 = scmp.ne.s32.totalorder %s45, %s61
    %p63 = scmp.eq.s32.totalorder %s16, 0
    %p64 = por %p62, %p63
    %s65 = sadd.s32 %s19, 1
    %s66 = sadd.s32 %s28, 1
    %s67 = ssub.s32 %s17, %s36
    %s68 = ssub.s32 %s65, %s66
    %s69 = sor.u32 %s67, %s68
    %p70 = scmp.eq.s32.totalorder %s69, 0
    %s72 = sadd.s32 %s71, 1
    %s73 = scalar_select %p70, %s71, %s72
    %p76 = pneg %p70
    %p77 = scmp.eq.s32.totalorder %s10, 3
    %p78 = por %p76, %p77
    %p79 = scmp.ne.s32.totalorder %s71, %s74
    %p80 = scmp.eq.s32.totalorder %s10, 0
    %p81 = por %p79, %p80
    %p82 = scmp.ne.s32.totalorder %s71, %s74
    %p83 = scmp.eq.s32.totalorder %s15, 3
    %p84 = por %p82, %p83
    %p85 = scmp.ne.s32.totalorder %s74, %s75
    %p86 = scmp.eq.s32.totalorder %s15, 0
    %p87 = por %p85, %p86
    %p88 = scmp.ne.s32.totalorder %s74, %s75
    %p89 = scmp.eq.s32.totalorder %s16, 3
    %p90 = por %p88, %p89
    %p92 = scmp.ne.s32.totalorder %s75, %s91
    %p93 = scmp.eq.s32.totalorder %s16, 0
    %p94 = por %p92, %p93
    %s95 = ssub.s32 %s18, %s32
    %p96 = scmp.eq.s32.totalorder %s95, 0
    %s98 = sadd.s32 %s97, 1
    %s99 = scalar_select %p96, %s97, %s98
    %p102 = pneg %p96
    %p103 = scmp.eq.s32.totalorder %s10, 3
    %p104 = por %p102, %p103
    %p105 = scmp.ne.s32.totalorder %s97, %s100
    %p106 = scmp.eq.s32.totalorder %s10, 0
    %p107 = por %p105, %p106
    %p108 = scmp.ne.s32.totalorder %s97, %s100
    %p109 = scmp.eq.s32.totalorder %s15, 3
    %p110 = por %p108, %p109
    %p111 = scmp.ne.s32.totalorder %s100, %s101
    %p112 = scmp.eq.s32.totalorder %s15, 0
    %p113 = por %p111, %p112
    %p114 = scmp.ne.s32.totalorder %s100, %s101
    %p115 = scmp.eq.s32.totalorder %s16, 3
    %p116 = por %p114, %p115
    %p118 = scmp.ne.s32.totalorder %s101, %s117
    %p119 = scmp.eq.s32.totalorder %s16, 0
    %p120 = por %p118, %p119
    %s121 = ssub.s32 %s18, %s32
    %p122 = scmp.eq.s32.totalorder %s121, 0
    %s124 = sadd.s32 %s123, 1
    %s125 = scalar_select %p122, %s123, %s124
    %p128 = pneg %p122
    %p129 = scmp.eq.s32.totalorder %s10, 3
    %p130 = por %p128, %p129
    %p131 = scmp.ne.s32.totalorder %s123, %s126
    %p132 = scmp.eq.s32.totalorder %s10, 0
    %p133 = por %p131, %p132
    %p134 = scmp.ne.s32.totalorder %s123, %s126
    %p135 = scmp.eq.s32.totalorder %s15, 3
    %p136 = por %p134, %p135
    %p137 = scmp.ne.s32.totalorder %s126, %s127
    %p138 = scmp.eq.s32.totalorder %s15, 0
    %p139 = por %p137, %p138
    %p140 = scmp.ne.s32.totalorder %s126, %s127
    %p141 = scmp.eq.s32.totalorder %s16, 3
    %p142 = por %p140, %p141
    %p144 = scmp.ne.s32.totalorder %s127, %s143
    %p145 = scmp.eq.s32.totalorder %s16, 0
    %p146 = por %p144, %p145
    %s147 = ssub.s32 %s17, %s36
    %s148 = ssub.s32 %s19, %s28
    %s149 = sor.u32 %s147, %s148
    %s150 = ssub.s32 %s18, %s32
    %s151 = sor.u32 %s149, %s150
    %p152 = scmp.eq.s32.totalorder %s151, 0
    %s154 = sadd.s32 %s153, 1
    %s155 = scalar_select %p152, %s153, %s154
    %p158 = pneg %p152
    %p159 = scmp.eq.s32.totalorder %s10, 3
    %p160 = por %p158, %p159
    %p161 = scmp.ne.s32.totalorder %s153, %s156
    %p162 = scmp.eq.s32.totalorder %s10, 0
    %p163 = por %p161, %p162
    %p164 = scmp.ne.s32.totalorder %s153, %s156
    %p165 = scmp.eq.s32.totalorder %s15, 3
    %p166 = por %p164, %p165
    %p167 = scmp.ne.s32.totalorder %s156, %s157
    %p168 = scmp.eq.s32.totalorder %s15, 0
    %p169 = por %p167, %p168
    %p170 = scmp.ne.s32.totalorder %s156, %s157
    %p171 = scmp.eq.s32.totalorder %s16, 3
    %p172 = por %p170, %p171
    %p174 = scmp.ne.s32.totalorder %s157, %s173
    %p175 = scmp.eq.s32.totalorder %s16, 0
    %p176 = por %p174, %p175
    %p177 = scmp.le.s32.totalorder 1, %s10
    %p178 = scmp.lt.s32.totalorder %s10, 5
    %p179 = pnand %p177, %p178
    %p180 = pneg %p179
    // Predicated region
    $region9: #{conv_bn_act.1} parent=5 // pred_check
      _
    $region10: #{conv_bn_act.1} parent=5 // pred_check_branch
      %182 = sbr.rel (%p179) target = $region12
    $region11: #{conv_bn_act.1} parent=5 // pred_region
      %s183 = ssub.s32 %s10, 1
      // Predicated region
      $region13: #{conv_bn_act.1} parent=11 // pred_check
        %p184 = pneg %p113
      $region14: #{conv_bn_act.1} parent=11 // pred_check_branch
        %186 = sbr.rel (%p184) target = $region16
      $region15: #{conv_bn_act.1} parent=11 // pred_region
        %p187 = scmp.lt.s32.totalorder %s21, 0
        %s188 = scalar_select %p187, %s21, 0
        %s189 = smul.addr %s188, 2
        %s190 = scalar_lea.vmem %s2, %s189
      $region16: #{conv_bn_act.1} parent=11 // pred_fallthru
        _
      // Predicated region
      $region17: #{conv_bn_act.1} parent=11 // pred_check
        %p191 = pneg %p139
      $region18: #{conv_bn_act.1} parent=11 // pred_check_branch
        %193 = sbr.rel (%p191) target = $region20
      $region19: #{conv_bn_act.1} parent=11 // pred_region
        %p194 = scmp.lt.s32.totalorder %s21, 0
        %s195 = scalar_select %p194, %s21, 0
        %s196 = scalar_lea.vmem %s3, %s195
      $region20: #{conv_bn_act.1} parent=11 // pred_fallthru
        _
    $region12: #{conv_bn_act.1} parent=5 // pred_fallthru
      _
    %p197 = scmp.lt.s32.totalorder %s10, 4
    // Predicated region
    $region21: #{conv_bn_act.1} parent=5 // pred_check
      %p198 = pneg %p197
    $region22: #{conv_bn_act.1} parent=5 // pred_check_branch
      %200 = sbr.rel (%p198) target = $region24
    $region23: #{conv_bn_act.1} parent=5 // pred_region
      // Predicated region
      $region25: #{conv_bn_act.1} parent=23 // pred_check
        %p201 = pneg %p51
      $region26: #{conv_bn_act.1} parent=23 // pred_check_branch
        %203 = sbr.rel (%p201) target = $region28
      $region27: #{conv_bn_act.1} parent=23 // pred_region
        %s204 = smul.u32 8, %s19
        %p205 = scmp.lt.s32.totalorder %s17, 1
        %s206 = scalar_select %p205, %s17, 1
        %p207 = scmp.lt.s32.totalorder %s204, 23
        %s208 = scalar_select %p207, %s204, 23
        %s209 = smul.addr %s208, 3
        %s210 = smul.addr %s206, 72
        %s211 = sadd.s32 %s209, %s210
        %s212 = smul.addr %s211, 4
        %s213 = scalar_lea.vmem %s0, %s212
        %s214 = smul.u32 8, %s19
      $region28: #{conv_bn_act.1} parent=23 // pred_fallthru
        _
      // Predicated region
      $region29: #{conv_bn_act.1} parent=23 // pred_check
        %p215 = pneg %p81
      $region30: #{conv_bn_act.1} parent=23 // pred_check_branch
        %217 = sbr.rel (%p215) target = $region32
      $region31: #{conv_bn_act.1} parent=23 // pred_region
        %s218 = sadd.s32 %s19, 1
        %s219 = smul.u32 8, %s218
        %p220 = scmp.lt.s32.totalorder %s17, 1
        %s221 = scalar_select %p220, %s17, 1
        %p222 = scmp.lt.s32.totalorder %s219, 23
        %s223 = scalar_select %p222, %s219, 23
        %s224 = smul.addr %s223, 3
        %s225 = smul.addr %s221, 72
        %s226 = sadd.s32 %s224, %s225
        %s227 = smul.addr %s226, 4
        %s228 = scalar_lea.vmem %s1, %s227
        %s229 = sadd.s32 %s19, 1
        %s230 = smul.u32 8, %s229
      $region32: #{conv_bn_act.1} parent=23 // pred_fallthru
        _
    $region24: #{conv_bn_act.1} parent=5 // pred_fallthru
      _
    %p231 = scmp.le.s32.totalorder 1, %s10
    %p232 = scmp.lt.s32.totalorder %s10, 5
    %p233 = pnand %p231, %p232
    %p234 = pneg %p233
    // Predicated region
    $region33: #{conv_bn_act.1} parent=5 // pred_check
      _
    $region34: #{conv_bn_act.1} parent=5 // pred_check_branch
      %236 = sbr.rel (%p233) target = $region36
    $region35: #{conv_bn_act.1} parent=5 // pred_region
      %s237 = ssub.s32 %s10, 1
      %s238 = smul.u32 8, %s22
      %p239 = scmp.lt.s32.totalorder %s20, 1
      %s240 = scalar_select %p239, %s20, 1
      %p241 = scmp.lt.s32.totalorder %s238, 23
      %s242 = scalar_select %p241, %s238, 23
      %s243 = smul.addr %s242, 3
      %s244 = smul.addr %s240, 72
      %s245 = sadd.s32 %s243, %s244
      %s246 = smul.addr %s245, 4
      %s247 = scalar_lea.vmem %s0, %s246
      %p248 = pneg %p57
      %p249 = pneg %p54
      %s250 = sadd.s32 %s22, 1
      %s251 = smul.u32 8, %s250
      %p252 = scmp.lt.s32.totalorder %s20, 1
      %s253 = scalar_select %p252, %s20, 1
      %p254 = scmp.lt.s32.totalorder %s251, 23
      %s255 = scalar_select %p254, %s251, 23
      %s256 = smul.addr %s255, 3
      %s257 = smul.addr %s253, 72
      %s258 = sadd.s32 %s256, %s257
      %s259 = smul.addr %s258, 4
      %s260 = scalar_lea.vmem %s1, %s259
      %p261 = pneg %p87
      %p262 = pneg %p84
      %p263 = scmp.lt.s32.totalorder %s21, 0
      %s264 = scalar_select %p263, %s21, 0
      %s265 = smul.addr %s264, 2
      %s266 = scalar_lea.vmem %s2, %s265
      %p267 = pneg %p113
      %p268 = pneg %p110
      %p269 = scmp.lt.s32.totalorder %s21, 0
      %s270 = scalar_select %p269, %s21, 0
      %s271 = scalar_lea.vmem %s3, %s270
      %p272 = pneg %p139
      %p273 = pneg %p136
      %p274 = pneg %p169
      %p275 = pneg %p166
      %s276 = smul.u32 8, %s22
      %p277 = scmp.lt.s32.totalorder %s20, 1
      %s278 = scalar_select %p277, %s20, 1
      %p279 = scmp.lt.s32.totalorder %s276, 15
      %s280 = scalar_select %p279, %s276, 15
      %p281 = scmp.lt.s32.totalorder %s21, 0
      %s282 = scalar_select %p281, %s21, 0
      %s283 = smul.addr %s280, 2
      %s284 = sadd.s32 %s282, %s283
      %s285 = smul.addr %s278, 32
      %s286 = sadd.s32 %s284, %s285
      %s287 = smul.addr %s286, 8
      %s288 = scalar_lea.vmem %s4, %s287
      %s289 = smul.u32 8, %s22
      %p290 = scmp.lt.s32.totalorder %s20, 1
      %s291 = scalar_select %p290, %s20, 1
      %p292 = scmp.lt.s32.totalorder %s289, 23
      %s293 = scalar_select %p292, %s289, 23
      %s294 = smul.addr %s293, 3
      %s295 = smul.addr %s291, 72
      %s296 = sadd.s32 %s294, %s295
      %s297 = smul.addr %s296, 4
      %s298 = scalar_lea.vmem %s0, %s297
      %s299 = smul.u32 8, %s22
      %s300 = sadd.s32 %s22, 1
      %s301 = smul.u32 8, %s300
      %p302 = scmp.lt.s32.totalorder %s20, 1
      %s303 = scalar_select %p302, %s20, 1
      %p304 = scmp.lt.s32.totalorder %s301, 23
      %s305 = scalar_select %p304, %s301, 23
      %s306 = smul.addr %s305, 3
      %s307 = smul.addr %s303, 72
      %s308 = sadd.s32 %s306, %s307
      %s309 = smul.addr %s308, 4
      %s310 = scalar_lea.vmem %s1, %s309
      %s311 = sadd.s32 %s22, 1
      %s312 = smul.u32 8, %s311
      %p313 = scmp.lt.s32.totalorder %s21, 0
      %s314 = scalar_select %p313, %s21, 0
      %s315 = smul.addr %s314, 2
      %s316 = scalar_lea.vmem %s2, %s315
      %p317 = scmp.lt.s32.totalorder %s21, 0
      %s318 = scalar_select %p317, %s21, 0
      %s319 = scalar_lea.vmem %s3, %s318
      %s320 = smul.u32 8, %s22
      %p321 = scmp.lt.s32.totalorder %s20, 1
      %s322 = scalar_select %p321, %s20, 1
      %p323 = scmp.lt.s32.totalorder %s320, 15
      %s324 = scalar_select %p323, %s320, 15
      %p325 = scmp.lt.s32.totalorder %s21, 0
      %s326 = scalar_select %p325, %s21, 0
      %s327 = smul.addr %s324, 2
      %s328 = sadd.s32 %s326, %s327
      %s329 = smul.addr %s322, 32
      %s330 = sadd.s32 %s328, %s329
      %s331 = smul.addr %s330, 8
      %s332 = scalar_lea.vmem %s4, %s331
      %s333 = smul.u32 8, %s22
      %v335 = vld [vmem:[%s298] sm:$0xf]
      %v336 = vld [vmem:[%s298 + $0x4] sm:$0xf]
      %v337 = vld [vmem:[%s298 + $0x8] sm:$0x1]
      %v338 = vld [vmem:[%s298 + $0xc] sm:$0xf]
      %v339 = vld [vmem:[%s298 + $0x10] sm:$0xf]
      %v340 = vld [vmem:[%s298 + $0x14] sm:$0x1]
      %v341 = vld [vmem:[%s298 + $0x18] sm:$0xf]
      %v342 = vld [vmem:[%s298 + $0x1c] sm:$0xf]
      %v343 = vld [vmem:[%s298 + $0x20] sm:$0x1]
      %v344 = vld [vmem:[%s298 + $0x24] sm:$0xf]
      %v345 = vld [vmem:[%s298 + $0x28] sm:$0xf]
      %v346 = vld [vmem:[%s298 + $0x2c] sm:$0x1]
      %v347 = vld [vmem:[%s298 + $0x30] sm:$0xf]
      %v348 = vld [vmem:[%s298 + $0x34] sm:$0xf]
      %v349 = vld [vmem:[%s298 + $0x38] sm:$0x1]
      %v350 = vld [vmem:[%s298 + $0x3c] sm:$0xf]
      %v351 = vld [vmem:[%s298 + $0x40] sm:$0xf]
      %v352 = vld [vmem:[%s298 + $0x44] sm:$0x1]
      %v353 = vld [vmem:[%s298 + $0x48] sm:$0xf]
      %v354 = vld [vmem:[%s298 + $0x4c] sm:$0xf]
      %v355 = vld [vmem:[%s298 + $0x50] sm:$0x1]
      %v356 = vld [vmem:[%s298 + $0x54] sm:$0xf]
      %v357 = vld [vmem:[%s298 + $0x58] sm:$0xf]
      %v358 = vld [vmem:[%s298 + $0x5c] sm:$0x1]
      %vm359 = vcmask 27648
      %360 = vst.msk [vmem:[#allocation2] sm:$0xf] %vm359, %v335
      %361 = vst.msk [vmem:[#allocation2 + $0x4] sm:$0xf] %vm359, %v336
      %vm362 = vcmask 24576
      %363 = vst.msk [vmem:[#allocation2 + $0x8] sm:$0x1] %vm362, %v337
      %364 = vst.msk [vmem:[#allocation2 + $0xc] sm:$0xf] %vm359, %v338
      %365 = vst.msk [vmem:[#allocation2 + $0x10] sm:$0xf] %vm359, %v339
      %366 = vst.msk [vmem:[#allocation2 + $0x14] sm:$0x1] %vm362, %v340
      %367 = vst.msk [vmem:[#allocation2 + $0x18] sm:$0xf] %vm359, %v341
      %368 = vst.msk [vmem:[#allocation2 + $0x1c] sm:$0xf] %vm359, %v342
      %369 = vst.msk [vmem:[#allocation2 + $0x20] sm:$0x1] %vm362, %v343
      %370 = vst.msk [vmem:[#allocation2 + $0x24] sm:$0xf] %vm359, %v344
      %371 = vst.msk [vmem:[#allocation2 + $0x28] sm:$0xf] %vm359, %v345
      %372 = vst.msk [vmem:[#allocation2 + $0x2c] sm:$0x1] %vm362, %v346
      %373 = vst.msk [vmem:[#allocation2 + $0x30] sm:$0xf] %vm359, %v347
      %374 = vst.msk [vmem:[#allocation2 + $0x34] sm:$0xf] %vm359, %v348
      %375 = vst.msk [vmem:[#allocation2 + $0x38] sm:$0x1] %vm362, %v349
      %376 = vst.msk [vmem:[#allocation2 + $0x3c] sm:$0xf] %vm359, %v350
      %377 = vst.msk [vmem:[#allocation2 + $0x40] sm:$0xf] %vm359, %v351
      %378 = vst.msk [vmem:[#allocation2 + $0x44] sm:$0x1] %vm362, %v352
      %379 = vst.msk [vmem:[#allocation2 + $0x48] sm:$0xf] %vm359, %v353
      %380 = vst.msk [vmem:[#allocation2 + $0x4c] sm:$0xf] %vm359, %v354
      %381 = vst.msk [vmem:[#allocation2 + $0x50] sm:$0x1] %vm362, %v355
      %382 = vst.msk [vmem:[#allocation2 + $0x54] sm:$0xf] %vm359, %v356
      %383 = vst.msk [vmem:[#allocation2 + $0x58] sm:$0xf] %vm359, %v357
      %384 = vst.msk [vmem:[#allocation2 + $0x5c] sm:$0x1] %vm362, %v358
      %v385 = vld [vmem:[%s310] sm:$0xf]
      %v386 = vld [vmem:[%s310 + $0x4] sm:$0xf]
      %v387 = vld [vmem:[%s310 + $0x8] sm:$0x1]
      %v388 = vld [vmem:[%s310 + $0xc] sm:$0xf]
      %v389 = vld [vmem:[%s310 + $0x10] sm:$0xf]
      %v390 = vld [vmem:[%s310 + $0x14] sm:$0x1]
      %v391 = vld [vmem:[%s310 + $0x18] sm:$0xf]
      %v392 = vld [vmem:[%s310 + $0x1c] sm:$0xf]
      %v393 = vld [vmem:[%s310 + $0x20] sm:$0x1]
      %v394 = vld [vmem:[%s310 + $0x24] sm:$0xf]
      %v395 = vld [vmem:[%s310 + $0x28] sm:$0xf]
      %v396 = vld [vmem:[%s310 + $0x2c] sm:$0x1]
      %v397 = vld [vmem:[%s310 + $0x30] sm:$0xf]
      %v398 = vld [vmem:[%s310 + $0x34] sm:$0xf]
      %v399 = vld [vmem:[%s310 + $0x38] sm:$0x1]
      %v400 = vld [vmem:[%s310 + $0x3c] sm:$0xf]
      %v401 = vld [vmem:[%s310 + $0x40] sm:$0xf]
      %v402 = vld [vmem:[%s310 + $0x44] sm:$0x1]
      %v403 = vld [vmem:[%s310 + $0x48] sm:$0xf]
      %v404 = vld [vmem:[%s310 + $0x4c] sm:$0xf]
      %v405 = vld [vmem:[%s310 + $0x50] sm:$0x1]
      %v406 = vld [vmem:[%s310 + $0x54] sm:$0xf]
      %v407 = vld [vmem:[%s310 + $0x58] sm:$0xf]
      %v408 = vld [vmem:[%s310 + $0x5c] sm:$0x1]
      %s409 = scalar_lea.vmem [#allocation2], 96
      %410 = vst.msk [vmem:[%s409] sm:$0xf] %vm359, %v385
      %411 = vst.msk [vmem:[%s409 + $0x4] sm:$0xf] %vm359, %v386
      %412 = vst.msk [vmem:[%s409 + $0x8] sm:$0x1] %vm362, %v387
      %413 = vst.msk [vmem:[%s409 + $0xc] sm:$0xf] %vm359, %v388
      %414 = vst.msk [vmem:[%s409 + $0x10] sm:$0xf] %vm359, %v389
      %415 = vst.msk [vmem:[%s409 + $0x14] sm:$0x1] %vm362, %v390
      %416 = vst.msk [vmem:[%s409 + $0x18] sm:$0xf] %vm359, %v391
      %417 = vst.msk [vmem:[%s409 + $0x1c] sm:$0xf] %vm359, %v392
      %418 = vst.msk [vmem:[%s409 + $0x20] sm:$0x1] %vm362, %v393
      %419 = vst.msk [vmem:[%s409 + $0x24] sm:$0xf] %vm359, %v394
      %420 = vst.msk [vmem:[%s409 + $0x28] sm:$0xf] %vm359, %v395
      %421 = vst.msk [vmem:[%s409 + $0x2c] sm:$0x1] %vm362, %v396
      %422 = vst.msk [vmem:[%s409 + $0x30] sm:$0xf] %vm359, %v397
      %423 = vst.msk [vmem:[%s409 + $0x34] sm:$0xf] %vm359, %v398
      %424 = vst.msk [vmem:[%s409 + $0x38] sm:$0x1] %vm362, %v399
      %425 = vst.msk [vmem:[%s409 + $0x3c] sm:$0xf] %vm359, %v400
      %426 = vst.msk [vmem:[%s409 + $0x40] sm:$0xf] %vm359, %v401
      %427 = vst.msk [vmem:[%s409 + $0x44] sm:$0x1] %vm362, %v402
      %428 = vst.msk [vmem:[%s409 + $0x48] sm:$0xf] %vm359, %v403
      %429 = vst.msk [vmem:[%s409 + $0x4c] sm:$0xf] %vm359, %v404
      %430 = vst.msk [vmem:[%s409 + $0x50] sm:$0x1] %vm362, %v405
      %431 = vst.msk [vmem:[%s409 + $0x54] sm:$0xf] %vm359, %v406
      %432 = vst.msk [vmem:[%s409 + $0x58] sm:$0xf] %vm359, %v407
      %433 = vst.msk [vmem:[%s409 + $0x5c] sm:$0x1] %vm362, %v408
      %v434 = vld [vmem:[#allocation2] sm:$0xf]
      %v435 = vld [vmem:[#allocation2 + $0x4] sm:$0xf]
      %v436 = vld [vmem:[#allocation2 + $0xc] sm:$0xf]
      %v437 = vld [vmem:[#allocation2 + $0x10] sm:$0xf]
      %v438 = vld [vmem:[#allocation2 + $0x18] sm:$0xf]
      %v439 = vld [vmem:[#allocation2 + $0x1c] sm:$0xf]
      %v440 = vld [vmem:[#allocation2 + $0x24] sm:$0xf]
      %v441 = vld [vmem:[#allocation2 + $0x28] sm:$0xf]
      %v442 = vld [vmem:[#allocation2 + $0x30] sm:$0xf]
      %v443 = vld [vmem:[#allocation2 + $0x34] sm:$0xf]
      %v444 = vld [vmem:[#allocation2 + $0x3c] sm:$0xf]
      %v445 = vld [vmem:[#allocation2 + $0x40] sm:$0xf]
      %v446 = vld [vmem:[#allocation2 + $0x48] sm:$0xf]
      %v447 = vld [vmem:[#allocation2 + $0x4c] sm:$0xf]
      %v448 = vld [vmem:[#allocation2 + $0x54] sm:$0xf]
      %v449 = vld [vmem:[#allocation2 + $0x58] sm:$0xf]
      %v450 = vld [vmem:[%s316] sm:$0x3]
      %v451 = vld [vmem:[#allocation2 + $0x8] sm:$0x1]
      %v452 = vld [vmem:[#allocation2 + $0x14] sm:$0x1]
      %v453 = vld [vmem:[#allocation2 + $0x20] sm:$0x1]
      %v454 = vld [vmem:[#allocation2 + $0x2c] sm:$0x1]
      %v455 = vld [vmem:[#allocation2 + $0x38] sm:$0x1]
      %v456 = vld [vmem:[#allocation2 + $0x44] sm:$0x1]
      %v457 = vld [vmem:[#allocation2 + $0x50] sm:$0x1]
      %v458 = vld [vmem:[#allocation2 + $0x5c] sm:$0x1]
      %vm459 = vsmask.f32 3328
      %vm460 = vsmask.f32 7440
      %vm461 = vmor %vm459, %vm460
      %v463 = vshrl.u32 %v434, 16
      %v465 = vrot.slane %v463, 4
      %v466 = vshll.u32 %v434, 16
      %v468 = vrot.slane %v466, 5
      %v469 = vor.u32 %v465, %v468
      %v470 = vrot.slane %v469, 4
      %v472 = vshll.u32 %v435, 16
      %v474 = vrot.slane %v472, 5
      %v475 = vsel %vm461, %v470, %v474
      %v476 = vshrl.u32 %v435, 16
      %v478 = vrot.slane %v476, 4
      %v479 = vor.u32 %v478, %v474
      %v480 = vrot.slane %v479, 4
      %v482 = vshll.u32 %v451, 16
      %v484 = vrot.slane %v482, 5
      %v485 = vsel %vm461, %v480, %v484
      %v487 = vshrl.u32 %v436, 16
      %v489 = vrot.slane %v487, 4
      %v490 = vshll.u32 %v436, 16
      %v492 = vrot.slane %v490, 5
      %v493 = vor.u32 %v489, %v492
      %v494 = vrot.slane %v493, 4
      %v496 = vshll.u32 %v437, 16
      %v498 = vrot.slane %v496, 5
      %v499 = vsel %vm461, %v494, %v498
      %v500 = vshrl.u32 %v437, 16
      %v502 = vrot.slane %v500, 4
      %v503 = vor.u32 %v502, %v498
      %v504 = vrot.slane %v503, 4
      %v506 = vshll.u32 %v452, 16
      %v508 = vrot.slane %v506, 5
      %v509 = vsel %vm461, %v504, %v508
      %v511 = vshrl.u32 %v438, 16
      %v513 = vrot.slane %v511, 4
      %v514 = vshll.u32 %v438, 16
      %v516 = vrot.slane %v514, 5
      %v517 = vor.u32 %v513, %v516
      %v518 = vrot.slane %v517, 4
      %v520 = vshll.u32 %v439, 16
      %v522 = vrot.slane %v520, 5
      %v523 = vsel %vm461, %v518, %v522
      %v524 = vshrl.u32 %v439, 16
      %v526 = vrot.slane %v524, 4
      %v527 = vor.u32 %v526, %v522
      %v528 = vrot.slane %v527, 4
      %v530 = vshll.u32 %v453, 16
      %v532 = vrot.slane %v530, 5
      %v533 = vsel %vm461, %v528, %v532
      %v535 = vshrl.u32 %v440, 16
      %v537 = vrot.slane %v535, 4
      %v538 = vshll.u32 %v440, 16
      %v540 = vrot.slane %v538, 5
      %v541 = vor.u32 %v537, %v540
      %v542 = vrot.slane %v541, 4
      %v544 = vshll.u32 %v441, 16
      %v546 = vrot.slane %v544, 5
      %v547 = vsel %vm461, %v542, %v546
      %v548 = vshrl.u32 %v441, 16
      %v550 = vrot.slane %v548, 4
      %v551 = vor.u32 %v550, %v546
      %v552 = vrot.slane %v551, 4
      %v554 = vshll.u32 %v454, 16
      %v556 = vrot.slane %v554, 5
      %v557 = vsel %vm461, %v552, %v556
      %v559 = vshrl.u32 %v442, 16
      %v561 = vrot.slane %v559, 4
      %v562 = vshll.u32 %v442, 16
      %v564 = vrot.slane %v562, 5
      %v565 = vor.u32 %v561, %v564
      %v566 = vrot.slane %v565, 4
      %v568 = vshll.u32 %v443, 16
      %v570 = vrot.slane %v568, 5
      %v571 = vsel %vm461, %v566, %v570
      %v572 = vshrl.u32 %v443, 16
      %v574 = vrot.slane %v572, 4
      %v575 = vor.u32 %v574, %v570
      %v576 = vrot.slane %v575, 4
      %v578 = vshll.u32 %v455, 16
      %v580 = vrot.slane %v578, 5
      %v581 = vsel %vm461, %v576, %v580
      %v583 = vshrl.u32 %v444, 16
      %v585 = vrot.slane %v583, 4
      %v586 = vshll.u32 %v444, 16
      %v588 = vrot.slane %v586, 5
      %v589 = vor.u32 %v585, %v588
      %v590 = vrot.slane %v589, 4
      %v592 = vshll.u32 %v445, 16
      %v594 = vrot.slane %v592, 5
      %v595 = vsel %vm461, %v590, %v594
      %v596 = vshrl.u32 %v445, 16
      %v598 = vrot.slane %v596, 4
      %v599 = vor.u32 %v598, %v594
      %v600 = vrot.slane %v599, 4
      %v602 = vshll.u32 %v456, 16
      %v604 = vrot.slane %v602, 5
      %v605 = vsel %vm461, %v600, %v604
      %v607 = vshrl.u32 %v446, 16
      %v609 = vrot.slane %v607, 4
      %v610 = vshll.u32 %v446, 16
      %v612 = vrot.slane %v610, 5
      %v613 = vor.u32 %v609, %v612
      %v614 = vrot.slane %v613, 4
      %v616 = vshll.u32 %v447, 16
      %v618 = vrot.slane %v616, 5
      %v619 = vsel %vm461, %v614, %v618
      %v620 = vshrl.u32 %v447, 16
      %v622 = vrot.slane %v620, 4
      %v623 = vor.u32 %v622, %v618
      %v624 = vrot.slane %v623, 4
      %v626 = vshll.u32 %v457, 16
      %v628 = vrot.slane %v626, 5
      %v629 = vsel %vm461, %v624, %v628
      %v631 = vshrl.u32 %v448, 16
      %v633 = vrot.slane %v631, 4
      %v634 = vshll.u32 %v448, 16
      %v636 = vrot.slane %v634, 5
      %v637 = vor.u32 %v633, %v636
      %v638 = vrot.slane %v637, 4
      %v640 = vshll.u32 %v449, 16
      %v642 = vrot.slane %v640, 5
      %v643 = vsel %vm461, %v638, %v642
      %v644 = vshrl.u32 %v449, 16
      %v646 = vrot.slane %v644, 4
      %v647 = vor.u32 %v646, %v642
      %v648 = vrot.slane %v647, 4
      %v650 = vshll.u32 %v458, 16
      %v652 = vrot.slane %v650, 5
      %v653 = vsel %vm461, %v648, %v652
      %s654 = scalar_lea.vmem %s316, 2
      %v655 = vld [vmem:[%s654] sm:$0x3]
      %v656 = vunpack.c.l.b16 %v475
      %v657 = vunpack.c.l.b16 %v485
      %v658 = vunpack.c.l.b16 %v499
      %v659 = vunpack.c.l.b16 %v509
      %v660 = vunpack.c.l.b16 %v523
      %v661 = vunpack.c.l.b16 %v533
      %v662 = vunpack.c.l.b16 %v547
      %v663 = vunpack.c.l.b16 %v557
      %v664 = vunpack.c.l.b16 %v571
      %v665 = vunpack.c.l.b16 %v581
      %v666 = vunpack.c.l.b16 %v595
      %v667 = vunpack.c.l.b16 %v605
      %v668 = vunpack.c.l.b16 %v619
      %v669 = vunpack.c.l.b16 %v629
      %v670 = vunpack.c.l.b16 %v643
      %v671 = vunpack.c.l.b16 %v653
      %v672 = vpack.c.b16 %v657, %v656
      %v673 = vpack.c.b16 %v659, %v658
      %v674 = vpack.c.b16 %v661, %v660
      %v675 = vpack.c.b16 %v663, %v662
      %v676 = vpack.c.b16 %v665, %v664
      %v677 = vpack.c.b16 %v667, %v666
      %v678 = vpack.c.b16 %v669, %v668
      %v679 = vpack.c.b16 %v671, %v670
      %vm680 = vcmask 31744
      %v682 = vsel %vm680, %v672, 0
      %v685 = vsel %vm680, %v673, 0
      %v688 = vsel %vm680, %v674, 0
      %v691 = vsel %vm680, %v675, 0
      %v694 = vsel %vm680, %v676, 0
      %v697 = vsel %vm680, %v677, 0
      %v700 = vsel %vm680, %v678, 0
      %v703 = vsel %vm680, %v679, 0
      %vm705 = vcmask 1041408
      %v707 = vsel %vm705, %v655, 0
      %709 = vmatprep.subr.bf16.mxu0 0
      %710 = vmatpush1.bf16.msra.mxu0 %v707
      %711 = vmatprep.subr.bf16.mxu0 0
      %712 = vmatpush1.bf16.msra.mxu0 0
      %713 = vmatprep.subr.bf16.mxu0 0
      %714 = vmatpush1.bf16.msra.mxu0 0
      %715 = vmatprep.subr.bf16.mxu0 0
      %716 = vmatpush1.bf16.msra.mxu0 0
      %717 = vmatprep.subr.bf16.mxu0 0
      %718 = vmatpush1.bf16.msra.mxu0 0
      %719 = vmatprep.subr.bf16.mxu0 0
      %720 = vmatpush1.bf16.msra.mxu0 0
      %721 = vmatprep.subr.bf16.mxu0 0
      %722 = vmatpush1.bf16.msra.mxu0 0
      %723 = vmatprep.subr.bf16.mxu0 0
      %724 = vmatpush1.bf16.msra.mxu0 0
      %725 = vmatprep.subr.bf16.mxu0 0
      %726 = vmatpush1.bf16.msra.mxu0 0
      %727 = vmatprep.subr.bf16.mxu0 0
      %728 = vmatpush1.bf16.msra.mxu0 0
      %729 = vmatprep.subr.bf16.mxu0 0
      %730 = vmatpush1.bf16.msra.mxu0 0
      %731 = vmatprep.subr.bf16.mxu0 0
      %732 = vmatpush1.bf16.msra.mxu0 0
      %733 = vmatprep.subr.bf16.mxu0 0
      %734 = vmatpush1.bf16.msra.mxu0 0
      %735 = vmatprep.subr.bf16.mxu0 0
      %736 = vmatpush1.bf16.msra.mxu0 0
      %737 = vmatprep.subr.bf16.mxu0 0
      %738 = vmatpush1.bf16.msra.mxu0 0
      %739 = vmatprep.subr.bf16.mxu0 0
      %740 = vmatpush1.bf16.msra.mxu0 0
      %741 = vmatprep.mubr.bf16.mxu0 0
      %742 = vmatmul.mubr.bf16.gmra.mrb[0].mxu0 %v682
      %v743 = vpop.f32.mrb[0].mxu0
      %v744 = vadd.f32 0.0, %v743
      %v745 = vpop.f32.mrb[0].mxu0
      %v746 = vpop.f32.mrb[0].mxu0
      %v747 = vadd.f32 0.0, %v746
      %v748 = vpop.f32.mrb[0].mxu0
      %749 = vmatprep.mubr.bf16.mxu0 0
      %750 = vmatmul.mubr.bf16.gmra.mrb[0].mxu0 %v685
      %v751 = vpop.f32.mrb[0].mxu0
      %v752 = vadd.f32 0.0, %v751
      %v753 = vpop.f32.mrb[0].mxu0
      %v754 = vpop.f32.mrb[0].mxu0
      %v755 = vadd.f32 0.0, %v754
      %v756 = vpop.f32.mrb[0].mxu0
      %757 = vmatprep.mubr.bf16.mxu0 0
      %758 = vmatmul.mubr.bf16.gmra.mrb[0].mxu0 %v688
      %v759 = vpop.f32.mrb[0].mxu0
      %v760 = vadd.f32 0.0, %v759
      %v761 = vpop.f32.mrb[0].mxu0
      %v762 = vpop.f32.mrb[0].mxu0
      %v763 = vadd.f32 0.0, %v762
      %v764 = vpop.f32.mrb[0].mxu0
      %765 = vmatprep.mubr.bf16.mxu0 0
      %766 = vmatmul.mubr.bf16.gmra.mrb[0].mxu0 %v691
      %v767 = vpop.f32.mrb[0].mxu0
      %v768 = vadd.f32 0.0, %v767
      %v769 = vpop.f32.mrb[0].mxu0
      %v770 = vpop.f32.mrb[0].mxu0
      %v771 = vadd.f32 0.0, %v770
      %v772 = vpop.f32.mrb[0].mxu0
      %773 = vmatprep.mubr.bf16.mxu0 0
      %774 = vmatmul.mubr.bf16.gmra.mrb[0].mxu0 %v694
      %v775 = vpop.f32.mrb[0].mxu0
      %v776 = vadd.f32 0.0, %v775
      %v777 = vpop.f32.mrb[0].mxu0
      %v778 = vpop.f32.mrb[0].mxu0
      %v779 = vadd.f32 0.0, %v778
      %v780 = vpop.f32.mrb[0].mxu0
      %781 = vmatprep.mubr.bf16.mxu0 0
      %782 = vmatmul.mubr.bf16.gmra.mrb[0].mxu0 %v697
      %v783 = vpop.f32.mrb[0].mxu0
      %v784 = vadd.f32 0.0, %v783
      %v785 = vpop.f32.mrb[0].mxu0
      %v786 = vpop.f32.mrb[0].mxu0
      %v787 = vadd.f32 0.0, %v786
      %v788 = vpop.f32.mrb[0].mxu0
      %789 = vmatprep.mubr.bf16.mxu0 0
      %790 = vmatmul.mubr.bf16.gmra.mrb[0].mxu0 %v700
      %v791 = vpop.f32.mrb[0].mxu0
      %v792 = vadd.f32 0.0, %v791
      %v793 = vpop.f32.mrb[0].mxu0
      %v794 = vpop.f32.mrb[0].mxu0
      %v795 = vadd.f32 0.0, %v794
      %v796 = vpop.f32.mrb[0].mxu0
      %797 = vmatprep.mubr.bf16.mxu0 0
      %798 = vmatmul.mubr.bf16.gmra.mrb[0].mxu0 %v703
      %v799 = vpop.f32.mrb[0].mxu0
      %v800 = vadd.f32 0.0, %v799
      %v801 = vpop.f32.mrb[0].mxu0
      %v802 = vpop.f32.mrb[0].mxu0
      %v803 = vadd.f32 0.0, %v802
      %v804 = vpop.f32.mrb[0].mxu0
      %805 = vdwg.mxu0
      %v822 = vunpack.c.l.b16 %v434
      %v823 = vunpack.c.l.b16 %v435
      %v824 = vunpack.c.l.b16 %v436
      %v825 = vunpack.c.l.b16 %v437
      %v826 = vunpack.c.l.b16 %v438
      %v827 = vunpack.c.l.b16 %v439
      %v828 = vunpack.c.l.b16 %v440
      %v829 = vunpack.c.l.b16 %v441
      %v830 = vunpack.c.l.b16 %v442
      %v831 = vunpack.c.l.b16 %v443
      %v832 = vunpack.c.l.b16 %v444
      %v833 = vunpack.c.l.b16 %v445
      %v834 = vunpack.c.l.b16 %v446
      %v835 = vunpack.c.l.b16 %v447
      %v836 = vunpack.c.l.b16 %v448
      %v837 = vunpack.c.l.b16 %v449
      %v838 = vpack.c.b16 %v823, %v822
      %v839 = vpack.c.b16 %v825, %v824
      %v840 = vpack.c.b16 %v827, %v826
      %v841 = vpack.c.b16 %v829, %v828
      %v842 = vpack.c.b16 %v831, %v830
      %v843 = vpack.c.b16 %v833, %v832
      %v844 = vpack.c.b16 %v835, %v834
      %v845 = vpack.c.b16 %v837, %v836
      %v847 = vsel %vm680, %v838, 0
      %v850 = vsel %vm680, %v839, 0
      %v853 = vsel %vm680, %v840, 0
      %v856 = vsel %vm680, %v841, 0
      %v859 = vsel %vm680, %v842, 0
      %v862 = vsel %vm680, %v843, 0
      %v865 = vsel %vm680, %v844, 0
      %v868 = vsel %vm680, %v845, 0
      %v871 = vsel %vm705, %v450, 0
      %873 = vmatprep.subr.bf16.mxu0 0
      %874 = vmatpush1.bf16.msra.mxu0 %v871
      %875 = vmatprep.subr.bf16.mxu0 0
      %876 = vmatpush1.bf16.msra.mxu0 0
      %877 = vmatprep.subr.bf16.mxu0 0
      %878 = vmatpush1.bf16.msra.mxu0 0
      %879 = vmatprep.subr.bf16.mxu0 0
      %880 = vmatpush1.bf16.msra.mxu0 0
      %881 = vmatprep.subr.bf16.mxu0 0
      %882 = vmatpush1.bf16.msra.mxu0 0
      %883 = vmatprep.subr.bf16.mxu0 0
      %884 = vmatpush1.bf16.msra.mxu0 0
      %885 = vmatprep.subr.bf16.mxu0 0
      %886 = vmatpush1.bf16.msra.mxu0 0
      %887 = vmatprep.subr.bf16.mxu0 0
      %888 = vmatpush1.bf16.msra.mxu0 0
      %889 = vmatprep.subr.bf16.mxu0 0
      %890 = vmatpush1.bf16.msra.mxu0 0
      %891 = vmatprep.subr.bf16.mxu0 0
      %892 = vmatpush1.bf16.msra.mxu0 0
      %893 = vmatprep.subr.bf16.mxu0 0
      %894 = vmatpush1.bf16.msra.mxu0 0
      %895 = vmatprep.subr.bf16.mxu0 0
      %896 = vmatpush1.bf16.msra.mxu0 0
      %897 = vmatprep.subr.bf16.mxu0 0
      %898 = vmatpush1.bf16.msra.mxu0 0
      %899 = vmatprep.subr.bf16.mxu0 0
      %900 = vmatpush1.bf16.msra.mxu0 0
      %901 = vmatprep.subr.bf16.mxu0 0
      %902 = vmatpush1.bf16.msra.mxu0 0
      %903 = vmatprep.subr.bf16.mxu0 0
      %904 = vmatpush1.bf16.msra.mxu0 0
      %905 = vmatprep.mubr.bf16.mxu0 0
      %906 = vmatmul.mubr.bf16.gmra.mrb[0].mxu0 %v847
      %v907 = vpop.f32.mrb[0].mxu0
      %v908 = vadd.f32 %v744, %v907
      %v909 = vpop.f32.mrb[0].mxu0
      %v910 = vpop.f32.mrb[0].mxu0
      %v911 = vadd.f32 %v747, %v910
      %v912 = vpop.f32.mrb[0].mxu0
      %913 = vmatprep.mubr.bf16.mxu0 0
      %914 = vmatmul.mubr.bf16.gmra.mrb[0].mxu0 %v850
      %v915 = vpop.f32.mrb[0].mxu0
      %v916 = vadd.f32 %v752, %v915
      %v917 = vpop.f32.mrb[0].mxu0
      %v918 = vpop.f32.mrb[0].mxu0
      %v919 = vadd.f32 %v755, %v918
      %v920 = vpop.f32.mrb[0].mxu0
      %921 = vmatprep.mubr.bf16.mxu0 0
      %922 = vmatmul.mubr.bf16.gmra.mrb[0].mxu0 %v853
      %v923 = vpop.f32.mrb[0].mxu0
      %v924 = vadd.f32 %v760, %v923
      %v925 = vpop.f32.mrb[0].mxu0
      %v926 = vpop.f32.mrb[0].mxu0
      %v927 = vadd.f32 %v763, %v926
      %v928 = vpop.f32.mrb[0].mxu0
      %929 = vmatprep.mubr.bf16.mxu0 0
      %930 = vmatmul.mubr.bf16.gmra.mrb[0].mxu0 %v856
      %v931 = vpop.f32.mrb[0].mxu0
      %v932 = vadd.f32 %v768, %v931
      %v933 = vpop.f32.mrb[0].mxu0
      %v934 = vpop.f32.mrb[0].mxu0
      %v935 = vadd.f32 %v771, %v934
      %v936 = vpop.f32.mrb[0].mxu0
      %937 = vmatprep.mubr.bf16.mxu0 0
      %938 = vmatmul.mubr.bf16.gmra.mrb[0].mxu0 %v859
      %v939 = vpop.f32.mrb[0].mxu0
      %v940 = vadd.f32 %v776, %v939
      %v941 = vpop.f32.mrb[0].mxu0
      %v942 = vpop.f32.mrb[0].mxu0
      %v943 = vadd.f32 %v779, %v942
      %v944 = vpop.f32.mrb[0].mxu0
      %945 = vmatprep.mubr.bf16.mxu0 0
      %946 = vmatmul.mubr.bf16.gmra.mrb[0].mxu0 %v862
      %v947 = vpop.f32.mrb[0].mxu0
      %v948 = vadd.f32 %v784, %v947
      %v949 = vpop.f32.mrb[0].mxu0
      %v950 = vpop.f32.mrb[0].mxu0
      %v951 = vadd.f32 %v787, %v950
      %v952 = vpop.f32.mrb[0].mxu0
      %953 = vmatprep.mubr.bf16.mxu0 0
      %954 = vmatmul.mubr.bf16.gmra.mrb[0].mxu0 %v865
      %v955 = vpop.f32.mrb[0].mxu0
      %v956 = vadd.f32 %v792, %v955
      %v957 = vpop.f32.mrb[0].mxu0
      %v958 = vpop.f32.mrb[0].mxu0
      %v959 = vadd.f32 %v795, %v958
      %v960 = vpop.f32.mrb[0].mxu0
      %961 = vmatprep.mubr.bf16.mxu0 0
      %962 = vmatmul.mubr.bf16.gmra.mrb[0].mxu0 %v868
      %v963 = vpop.f32.mrb[0].mxu0
      %v964 = vadd.f32 %v800, %v963
      %v965 = vpop.f32.mrb[0].mxu0
      %v966 = vpop.f32.mrb[0].mxu0
      %v967 = vadd.f32 %v803, %v966
      %v968 = vpop.f32.mrb[0].mxu0
      %969 = vdwg.mxu0
      %v970 = vld [vmem:[#allocation2] sm:$0xe]
      %v971 = vld [vmem:[#allocation2 + $0xc] sm:$0xe]
      %v972 = vld [vmem:[#allocation2 + $0x18] sm:$0xe]
      %v973 = vld [vmem:[#allocation2 + $0x24] sm:$0xe]
      %v974 = vld [vmem:[#allocation2 + $0x30] sm:$0xe]
      %v975 = vld [vmem:[#allocation2 + $0x3c] sm:$0xe]
      %v976 = vld [vmem:[#allocation2 + $0x48] sm:$0xe]
      %v977 = vld [vmem:[#allocation2 + $0x54] sm:$0xe]
      %vm994 = vcmask 1042432
      %vm995 = vcmask 1046532
      %vm996 = vmor %vm994, %vm995
      %v997 = vrot.slane %v970, 5
      %v998 = vrot.slane %v997, 4
      %v999 = vrot.slane %v435, 5
      %v1000 = vsel %vm996, %v998, %v999
      %v1001 = vrot.slane %v999, 4
      %v1002 = vrot.slane %v451, 5
      %v1003 = vsel %vm996, %v1001, %v1002
      %v1004 = vrot.slane %v971, 5
      %v1005 = vrot.slane %v1004, 4
      %v1006 = vrot.slane %v437, 5
      %v1007 = vsel %vm996, %v1005, %v1006
      %v1008 = vrot.slane %v1006, 4
      %v1009 = vrot.slane %v452, 5
      %v1010 = vsel %vm996, %v1008, %v1009
      %v1011 = vrot.slane %v972, 5
      %v1012 = vrot.slane %v1011, 4
      %v1013 = vrot.slane %v439, 5
      %v1014 = vsel %vm996, %v1012, %v1013
      %v1015 = vrot.slane %v1013, 4
      %v1016 = vrot.slane %v453, 5
      %v1017 = vsel %vm996, %v1015, %v1016
      %v1018 = vrot.slane %v973, 5
      %v1019 = vrot.slane %v1018, 4
      %v1020 = vrot.slane %v441, 5
      %v1021 = vsel %vm996, %v1019, %v1020
      %v1022 = vrot.slane %v1020, 4
      %v1023 = vrot.slane %v454, 5
      %v1024 = vsel %vm996, %v1022, %v1023
      %v1025 = vrot.slane %v974, 5
      %v1026 = vrot.slane %v1025, 4
      %v1027 = vrot.slane %v443, 5
      %v1028 = vsel %vm996, %v1026, %v1027
      %v1029 = vrot.slane %v1027, 4
      %v1030 = vrot.slane %v455, 5
      %v1031 = vsel %vm996, %v1029, %v1030
      %v1032 = vrot.slane %v975, 5
      %v1033 = vrot.slane %v1032, 4
      %v1034 = vrot.slane %v445, 5
      %v1035 = vsel %vm996, %v1033, %v1034
      %v1036 = vrot.slane %v1034, 4
      %v1037 = vrot.slane %v456, 5
      %v1038 = vsel %vm996, %v1036, %v1037
      %v1039 = vrot.slane %v976, 5
      %v1040 = vrot.slane %v1039, 4
      %v1041 = vrot.slane %v447, 5
      %v1042 = vsel %vm996, %v1040, %v1041
      %v1043 = vrot.slane %v1041, 4
      %v1044 = vrot.slane %v457, 5
      %v1045 = vsel %vm996, %v1043, %v1044
      %v1046 = vrot.slane %v977, 5
      %v1047 = vrot.slane %v1046, 4
      %v1048 = vrot.slane %v449, 5
      %v1049 = vsel %vm996, %v1047, %v1048
      %v1050 = vrot.slane %v1048, 4
      %v1051 = vrot.slane %v458, 5
      %v1052 = vsel %vm996, %v1050, %v1051
      %s1053 = scalar_lea.vmem %s316, 4
      %v1054 = vld [vmem:[%s1053] sm:$0x3]
      %v1055 = vunpack.c.l.b16 %v1000
      %v1056 = vunpack.c.l.b16 %v1003
      %v1057 = vunpack.c.l.b16 %v1007
      %v1058 = vunpack.c.l.b16 %v1010
      %v1059 = vunpack.c.l.b16 %v1014
      %v1060 = vunpack.c.l.b16 %v1017
      %v1061 = vunpack.c.l.b16 %v1021
      %v1062 = vunpack.c.l.b16 %v1024
      %v1063 = vunpack.c.l.b16 %v1028
      %v1064 = vunpack.c.l.b16 %v1031
      %v1065 = vunpack.c.l.b16 %v1035
      %v1066 = vunpack.c.l.b16 %v1038
      %v1067 = vunpack.c.l.b16 %v1042
      %v1068 = vunpack.c.l.b16 %v1045
      %v1069 = vunpack.c.l.b16 %v1049
      %v1070 = vunpack.c.l.b16 %v1052
      %v1071 = vpack.c.b16 %v1056, %v1055
      %v1072 = vpack.c.b16 %v1058, %v1057
      %v1073 = vpack.c.b16 %v1060, %v1059
      %v1074 = vpack.c.b16 %v1062, %v1061
      %v1075 = vpack.c.b16 %v1064, %v1063
      %v1076 = vpack.c.b16 %v1066, %v1065
      %v1077 = vpack.c.b16 %v1068, %v1067
      %v1078 = vpack.c.b16 %v1070, %v1069
      %v1080 = vsel %vm680, %v1071, 0
      %v1083 = vsel %vm680, %v1072, 0
      %v1086 = vsel %vm680, %v1073, 0
      %v1089 = vsel %vm680, %v1074, 0
      %v1092 = vsel %vm680, %v1075, 0
      %v1095 = vsel %vm680, %v1076, 0
      %v1098 = vsel %vm680, %v1077, 0
      %v1101 = vsel %vm680, %v1078, 0
      %v1104 = vsel %vm705, %v1054, 0
      %1106 = vmatprep.subr.bf16.mxu0 0
      %1107 = vmatpush1.bf16.msra.mxu0 %v1104
      %1108 = vmatprep.subr.bf16.mxu0 0
      %1109 = vmatpush1.bf16.msra.mxu0 0
      %1110 = vmatprep.subr.bf16.mxu0 0
      %1111 = vmatpush1.bf16.msra.mxu0 0
      %1112 = vmatprep.subr.bf16.mxu0 0
      %1113 = vmatpush1.bf16.msra.mxu0 0
      %1114 = vmatprep.subr.bf16.mxu0 0
      %1115 = vmatpush1.bf16.msra.mxu0 0
      %1116 = vmatprep.subr.bf16.mxu0 0
      %1117 = vmatpush1.bf16.msra.mxu0 0
      %1118 = vmatprep.subr.bf16.mxu0 0
      %1119 = vmatpush1.bf16.msra.mxu0 0
      %1120 = vmatprep.subr.bf16.mxu0 0
      %1121 = vmatpush1.bf16.msra.mxu0 0
      %1122 = vmatprep.subr.bf16.mxu0 0
      %1123 = vmatpush1.bf16.msra.mxu0 0
      %1124 = vmatprep.subr.bf16.mxu0 0
      %1125 = vmatpush1.bf16.msra.mxu0 0
      %1126 = vmatprep.subr.bf16.mxu0 0
      %1127 = vmatpush1.bf16.msra.mxu0 0
      %1128 = vmatprep.subr.bf16.mxu0 0
      %1129 = vmatpush1.bf16.msra.mxu0 0
      %1130 = vmatprep.subr.bf16.mxu0 0
      %1131 = vmatpush1.bf16.msra.mxu0 0
      %1132 = vmatprep.subr.bf16.mxu0 0
      %1133 = vmatpush1.bf16.msra.mxu0 0
      %1134 = vmatprep.subr.bf16.mxu0 0
      %1135 = vmatpush1.bf16.msra.mxu0 0
      %1136 = vmatprep.subr.bf16.mxu0 0
      %1137 = vmatpush1.bf16.msra.mxu0 0
      %1138 = vmatprep.mubr.bf16.mxu0 0
      %1139 = vmatmul.mubr.bf16.gmra.mrb[0].mxu0 %v1080
      %v1140 = vpop.f32.mrb[0].mxu0
      %v1141 = vadd.f32 0.0, %v1140
      %v1142 = vpop.f32.mrb[0].mxu0
      %v1143 = vpop.f32.mrb[0].mxu0
      %v1144 = vadd.f32 0.0, %v1143
      %v1145 = vpop.f32.mrb[0].mxu0
      %1146 = vmatprep.mubr.bf16.mxu0 0
      %1147 = vmatmul.mubr.bf16.gmra.mrb[0].mxu0 %v1083
      %v1148 = vpop.f32.mrb[0].mxu0
      %v1149 = vadd.f32 0.0, %v1148
      %v1150 = vpop.f32.mrb[0].mxu0
      %v1151 = vpop.f32.mrb[0].mxu0
      %v1152 = vadd.f32 0.0, %v1151
      %v1153 = vpop.f32.mrb[0].mxu0
      %1154 = vmatprep.mubr.bf16.mxu0 0
      %1155 = vmatmul.mubr.bf16.gmra.mrb[0].mxu0 %v1086
      %v1156 = vpop.f32.mrb[0].mxu0
      %v1157 = vadd.f32 0.0, %v1156
      %v1158 = vpop.f32.mrb[0].mxu0
      %v1159 = vpop.f32.mrb[0].mxu0
      %v1160 = vadd.f32 0.0, %v1159
      %v1161 = vpop.f32.mrb[0].mxu0
      %1162 = vmatprep.mubr.bf16.mxu0 0
      %1163 = vmatmul.mubr.bf16.gmra.mrb[0].mxu0 %v1089
      %v1164 = vpop.f32.mrb[0].mxu0
      %v1165 = vadd.f32 0.0, %v1164
      %v1166 = vpop.f32.mrb[0].mxu0
      %v1167 = vpop.f32.mrb[0].mxu0
      %v1168 = vadd.f32 0.0, %v1167
      %v1169 = vpop.f32.mrb[0].mxu0
      %1170 = vmatprep.mubr.bf16.mxu0 0
      %1171 = vmatmul.mubr.bf16.gmra.mrb[0].mxu0 %v1092
      %v1172 = vpop.f32.mrb[0].mxu0
      %v1173 = vadd.f32 0.0, %v1172
      %v1174 = vpop.f32.mrb[0].mxu0
      %v1175 = vpop.f32.mrb[0].mxu0
      %v1176 = vadd.f32 0.0, %v1175
      %v1177 = vpop.f32.mrb[0].mxu0
      %1178 = vmatprep.mubr.bf16.mxu0 0
      %1179 = vmatmul.mubr.bf16.gmra.mrb[0].mxu0 %v1095
      %v1180 = vpop.f32.mrb[0].mxu0
      %v1181 = vadd.f32 0.0, %v1180
      %v1182 = vpop.f32.mrb[0].mxu0
      %v1183 = vpop.f32.mrb[0].mxu0
      %v1184 = vadd.f32 0.0, %v1183
      %v1185 = vpop.f32.mrb[0].mxu0
      %1186 = vmatprep.mubr.bf16.mxu0 0
      %1187 = vmatmul.mubr.bf16.gmra.mrb[0].mxu0 %v1098
      %v1188 = vpop.f32.mrb[0].mxu0
      %v1189 = vadd.f32 0.0, %v1188
      %v1190 = vpop.f32.mrb[0].mxu0
      %v1191 = vpop.f32.mrb[0].mxu0
      %v1192 = vadd.f32 0.0, %v1191
      %v1193 = vpop.f32.mrb[0].mxu0
      %1194 = vmatprep.mubr.bf16.mxu0 0
      %1195 = vmatmul.mubr.bf16.gmra.mrb[0].mxu0 %v1101
      %v1196 = vpop.f32.mrb[0].mxu0
      %v1197 = vadd.f32 0.0, %v1196
      %v1198 = vpop.f32.mrb[0].mxu0
      %v1199 = vpop.f32.mrb[0].mxu0
      %v1200 = vadd.f32 0.0, %v1199
      %v1201 = vpop.f32.mrb[0].mxu0
      %1202 = vdwg.mxu0
      %v1203 = vadd.f32 %v908, %v1141
      %v1204 = vadd.f32 %v911, %v1144
      %v1205 = vadd.f32 %v916, %v1149
      %v1206 = vadd.f32 %v919, %v1152
      %v1207 = vadd.f32 %v924, %v1157
      %v1208 = vadd.f32 %v927, %v1160
      %v1209 = vadd.f32 %v932, %v1165
      %v1210 = vadd.f32 %v935, %v1168
      %v1211 = vadd.f32 %v940, %v1173
      %v1212 = vadd.f32 %v943, %v1176
      %v1213 = vadd.f32 %v948, %v1181
      %v1214 = vadd.f32 %v951, %v1184
      %v1215 = vadd.f32 %v956, %v1189
      %v1216 = vadd.f32 %v959, %v1192
      %v1217 = vadd.f32 %v964, %v1197
      %v1218 = vadd.f32 %v967, %v1200
      %s1219 = scalar_lea.vmem [#allocation2], 12
      %v1220 = vld [vmem:[%s1219] sm:$0xf]
      %v1221 = vld [vmem:[%s1219 + $0x4] sm:$0xf]
      %v1222 = vld [vmem:[%s1219 + $0xc] sm:$0xf]
      %v1223 = vld [vmem:[%s1219 + $0x10] sm:$0xf]
      %v1224 = vld [vmem:[%s1219 + $0x18] sm:$0xf]
      %v1225 = vld [vmem:[%s1219 + $0x1c] sm:$0xf]
      %v1226 = vld [vmem:[%s1219 + $0x24] sm:$0xf]
      %v1227 = vld [vmem:[%s1219 + $0x28] sm:$0xf]
      %v1228 = vld [vmem:[%s1219 + $0x30] sm:$0xf]
      %v1229 = vld [vmem:[%s1219 + $0x34] sm:$0xf]
      %v1230 = vld [vmem:[%s1219 + $0x3c] sm:$0xf]
      %v1231 = vld [vmem:[%s1219 + $0x40] sm:$0xf]
      %v1232 = vld [vmem:[%s1219 + $0x48] sm:$0xf]
      %v1233 = vld [vmem:[%s1219 + $0x4c] sm:$0xf]
      %v1234 = vld [vmem:[%s1219 + $0x54] sm:$0xf]
      %v1235 = vld [vmem:[%s1219 + $0x58] sm:$0xf]
      %s1236 = scalar_lea.vmem %s316, 6
      %v1237 = vld [vmem:[%s1236] sm:$0x3]
      %v1254 = vunpack.c.l.b16 %v1220
      %v1255 = vunpack.c.l.b16 %v1221
      %v1256 = vunpack.c.l.b16 %v1222
      %v1257 = vunpack.c.l.b16 %v1223
      %v1258 = vunpack.c.l.b16 %v1224
      %v1259 = vunpack.c.l.b16 %v1225
      %v1260 = vunpack.c.l.b16 %v1226
      %v1261 = vunpack.c.l.b16 %v1227
      %v1262 = vunpack.c.l.b16 %v1228
      %v1263 = vunpack.c.l.b16 %v1229
      %v1264 = vunpack.c.l.b16 %v1230
      %v1265 = vunpack.c.l.b16 %v1231
      %v1266 = vunpack.c.l.b16 %v1232
      %v1267 = vunpack.c.l.b16 %v1233
      %v1268 = vunpack.c.l.b16 %v1234
      %v1269 = vunpack.c.l.b16 %v1235
      %v1270 = vpack.c.b16 %v1255, %v1254
      %v1271 = vpack.c.b16 %v1257, %v1256
      %v1272 = vpack.c.b16 %v1259, %v1258
      %v1273 = vpack.c.b16 %v1261, %v1260
      %v1274 = vpack.c.b16 %v1263, %v1262
      %v1275 = vpack.c.b16 %v1265, %v1264
      %v1276 = vpack.c.b16 %v1267, %v1266
      %v1277 = vpack.c.b16 %v1269, %v1268
      %v1279 = vsel %vm680, %v1270, 0
      %v1282 = vsel %vm680, %v1271, 0
      %v1285 = vsel %vm680, %v1272, 0
      %v1288 = vsel %vm680, %v1273, 0
      %v1291 = vsel %vm680, %v1274, 0
      %v1294 = vsel %vm680, %v1275, 0
      %v1297 = vsel %vm680, %v1276, 0
      %v1300 = vsel %vm680, %v1277, 0
      %v1303 = vsel %vm705, %v1237, 0
      %1305 = vmatprep.subr.bf16.mxu0 0
      %1306 = vmatpush1.bf16.msra.mxu0 %v1303
      %1307 = vmatprep.subr.bf16.mxu0 0
      %1308 = vmatpush1.bf16.msra.mxu0 0
      %1309 = vmatprep.subr.bf16.mxu0 0
      %1310 = vmatpush1.bf16.msra.mxu0 0
      %1311 = vmatprep.subr.bf16.mxu0 0
      %1312 = vmatpush1.bf16.msra.mxu0 0
      %1313 = vmatprep.subr.bf16.mxu0 0
      %1314 = vmatpush1.bf16.msra.mxu0 0
      %1315 = vmatprep.subr.bf16.mxu0 0
      %1316 = vmatpush1.bf16.msra.mxu0 0
      %1317 = vmatprep.subr.bf16.mxu0 0
      %1318 = vmatpush1.bf16.msra.mxu0 0
      %1319 = vmatprep.subr.bf16.mxu0 0
      %1320 = vmatpush1.bf16.msra.mxu0 0
      %1321 = vmatprep.subr.bf16.mxu0 0
      %1322 = vmatpush1.bf16.msra.mxu0 0
      %1323 = vmatprep.subr.bf16.mxu0 0
      %1324 = vmatpush1.bf16.msra.mxu0 0
      %1325 = vmatprep.subr.bf16.mxu0 0
      %1326 = vmatpush1.bf16.msra.mxu0 0
      %1327 = vmatprep.subr.bf16.mxu0 0
      %1328 = vmatpush1.bf16.msra.mxu0 0
      %1329 = vmatprep.subr.bf16.mxu0 0
      %1330 = vmatpush1.bf16.msra.mxu0 0
      %1331 = vmatprep.subr.bf16.mxu0 0
      %1332 = vmatpush1.bf16.msra.mxu0 0
      %1333 = vmatprep.subr.bf16.mxu0 0
      %1334 = vmatpush1.bf16.msra.mxu0 0
      %1335 = vmatprep.subr.bf16.mxu0 0
      %1336 = vmatpush1.bf16.msra.mxu0 0
      %1337 = vmatprep.mubr.bf16.mxu0 0
      %1338 = vmatmul.mubr.bf16.gmra.mrb[0].mxu0 %v1279
      %v1339 = vpop.f32.mrb[0].mxu0
      %v1340 = vadd.f32 0.0, %v1339
      %v1341 = vpop.f32.mrb[0].mxu0
      %v1342 = vpop.f32.mrb[0].mxu0
      %v1343 = vadd.f32 0.0, %v1342
      %v1344 = vpop.f32.mrb[0].mxu0
      %1345 = vmatprep.mubr.bf16.mxu0 0
      %1346 = vmatmul.mubr.bf16.gmra.mrb[0].mxu0 %v1282
      %v1347 = vpop.f32.mrb[0].mxu0
      %v1348 = vadd.f32 0.0, %v1347
      %v1349 = vpop.f32.mrb[0].mxu0
      %v1350 = vpop.f32.mrb[0].mxu0
      %v1351 = vadd.f32 0.0, %v1350
      %v1352 = vpop.f32.mrb[0].mxu0
      %1353 = vmatprep.mubr.bf16.mxu0 0
      %1354 = vmatmul.mubr.bf16.gmra.mrb[0].mxu0 %v1285
      %v1355 = vpop.f32.mrb[0].mxu0
      %v1356 = vadd.f32 0.0, %v1355
      %v1357 = vpop.f32.mrb[0].mxu0
      %v1358 = vpop.f32.mrb[0].mxu0
      %v1359 = vadd.f32 0.0, %v1358
      %v1360 = vpop.f32.mrb[0].mxu0
      %1361 = vmatprep.mubr.bf16.mxu0 0
      %1362 = vmatmul.mubr.bf16.gmra.mrb[0].mxu0 %v1288
      %v1363 = vpop.f32.mrb[0].mxu0
      %v1364 = vadd.f32 0.0, %v1363
      %v1365 = vpop.f32.mrb[0].mxu0
      %v1366 = vpop.f32.mrb[0].mxu0
      %v1367 = vadd.f32 0.0, %v1366
      %v1368 = vpop.f32.mrb[0].mxu0
      %1369 = vmatprep.mubr.bf16.mxu0 0
      %1370 = vmatmul.mubr.bf16.gmra.mrb[0].mxu0 %v1291
      %v1371 = vpop.f32.mrb[0].mxu0
      %v1372 = vadd.f32 0.0, %v1371
      %v1373 = vpop.f32.mrb[0].mxu0
      %v1374 = vpop.f32.mrb[0].mxu0
      %v1375 = vadd.f32 0.0, %v1374
      %v1376 = vpop.f32.mrb[0].mxu0
      %1377 = vmatprep.mubr.bf16.mxu0 0
      %1378 = vmatmul.mubr.bf16.gmra.mrb[0].mxu0 %v1294
      %v1379 = vpop.f32.mrb[0].mxu0
      %v1380 = vadd.f32 0.0, %v1379
      %v1381 = vpop.f32.mrb[0].mxu0
      %v1382 = vpop.f32.mrb[0].mxu0
      %v1383 = vadd.f32 0.0, %v1382
      %v1384 = vpop.f32.mrb[0].mxu0
      %1385 = vmatprep.mubr.bf16.mxu0 0
      %1386 = vmatmul.mubr.bf16.gmra.mrb[0].mxu0 %v1297
      %v1387 = vpop.f32.mrb[0].mxu0
      %v1388 = vadd.f32 0.0, %v1387
      %v1389 = vpop.f32.mrb[0].mxu0
      %v1390 = vpop.f32.mrb[0].mxu0
      %v1391 = vadd.f32 0.0, %v1390
      %v1392 = vpop.f32.mrb[0].mxu0
      %1393 = vmatprep.mubr.bf16.mxu0 0
      %1394 = vmatmul.mubr.bf16.gmra.mrb[0].mxu0 %v1300
      %v1395 = vpop.f32.mrb[0].mxu0
      %v1396 = vadd.f32 0.0, %v1395
      %v1397 = vpop.f32.mrb[0].mxu0
      %v1398 = vpop.f32.mrb[0].mxu0
      %v1399 = vadd.f32 0.0, %v1398
      %v1400 = vpop.f32.mrb[0].mxu0
      %1401 = vdwg.mxu0
      %v1402 = vadd.f32 %v1203, %v1340
      %v1403 = vadd.f32 %v1204, %v1343
      %v1404 = vadd.f32 %v1205, %v1348
      %v1405 = vadd.f32 %v1206, %v1351
      %v1406 = vadd.f32 %v1207, %v1356
      %v1407 = vadd.f32 %v1208, %v1359
      %v1408 = vadd.f32 %v1209, %v1364
      %v1409 = vadd.f32 %v1210, %v1367
      %v1410 = vadd.f32 %v1211, %v1372
      %v1411 = vadd.f32 %v1212, %v1375
      %v1412 = vadd.f32 %v1213, %v1380
      %v1413 = vadd.f32 %v1214, %v1383
      %v1414 = vadd.f32 %v1215, %v1388
      %v1415 = vadd.f32 %v1216, %v1391
      %v1416 = vadd.f32 %v1217, %v1396
      %v1417 = vadd.f32 %v1218, %v1399
      %v1418 = vld [vmem:[%s1219] sm:$0xf]
      %v1419 = vld [vmem:[%s1219 + $0x4] sm:$0xf]
      %v1420 = vld [vmem:[%s1219 + $0x8] sm:$0x1]
      %v1421 = vld [vmem:[%s1219 + $0xc] sm:$0xf]
      %v1422 = vld [vmem:[%s1219 + $0x10] sm:$0xf]
      %v1423 = vld [vmem:[%s1219 + $0x14] sm:$0x1]
      %v1424 = vld [vmem:[%s1219 + $0x18] sm:$0xf]
      %v1425 = vld [vmem:[%s1219 + $0x1c] sm:$0xf]
      %v1426 = vld [vmem:[%s1219 + $0x20] sm:$0x1]
      %v1427 = vld [vmem:[%s1219 + $0x24] sm:$0xf]
      %v1428 = vld [vmem:[%s1219 + $0x28] sm:$0xf]
      %v1429 = vld [vmem:[%s1219 + $0x2c] sm:$0x1]
      %v1430 = vld [vmem:[%s1219 + $0x30] sm:$0xf]
      %v1431 = vld [vmem:[%s1219 + $0x34] sm:$0xf]
      %v1432 = vld [vmem:[%s1219 + $0x38] sm:$0x1]
      %v1433 = vld [vmem:[%s1219 + $0x3c] sm:$0xf]
      %v1434 = vld [vmem:[%s1219 + $0x40] sm:$0xf]
      %v1435 = vld [vmem:[%s1219 + $0x44] sm:$0x1]
      %v1436 = vld [vmem:[%s1219 + $0x48] sm:$0xf]
      %v1437 = vld [vmem:[%s1219 + $0x4c] sm:$0xf]
      %v1438 = vld [vmem:[%s1219 + $0x50] sm:$0x1]
      %v1439 = vld [vmem:[%s1219 + $0x54] sm:$0xf]
      %v1440 = vld [vmem:[%s1219 + $0x58] sm:$0xf]
      %v1441 = vld [vmem:[%s1219 + $0x5c] sm:$0x1]
      %v1443 = vshrl.u32 %v1418, 16
      %v1445 = vrot.slane %v1443, 4
      %v1446 = vshll.u32 %v1418, 16
      %v1448 = vrot.slane %v1446, 5
      %v1449 = vor.u32 %v1445, %v1448
      %v1450 = vrot.slane %v1449, 4
      %v1452 = vshll.u32 %v1419, 16
      %v1454 = vrot.slane %v1452, 5
      %v1455 = vsel %vm461, %v1450, %v1454
      %v1456 = vshrl.u32 %v1419, 16
      %v1458 = vrot.slane %v1456, 4
      %v1459 = vor.u32 %v1458, %v1454
      %v1460 = vrot.slane %v1459, 4
      %v1462 = vshll.u32 %v1420, 16
      %v1464 = vrot.slane %v1462, 5
      %v1465 = vsel %vm461, %v1460, %v1464
      %v1467 = vshrl.u32 %v1421, 16
      %v1469 = vrot.slane %v1467, 4
      %v1470 = vshll.u32 %v1421, 16
      %v1472 = vrot.slane %v1470, 5
      %v1473 = vor.u32 %v1469, %v1472
      %v1474 = vrot.slane %v1473, 4
      %v1476 = vshll.u32 %v1422, 16
      %v1478 = vrot.slane %v1476, 5
      %v1479 = vsel %vm461, %v1474, %v1478
      %v1480 = vshrl.u32 %v1422, 16
      %v1482 = vrot.slane %v1480, 4
      %v1483 = vor.u32 %v1482, %v1478
      %v1484 = vrot.slane %v1483, 4
      %v1486 = vshll.u32 %v1423, 16
      %v1488 = vrot.slane %v1486, 5
      %v1489 = vsel %vm461, %v1484, %v1488
      %v1491 = vshrl.u32 %v1424, 16
      %v1493 = vrot.slane %v1491, 4
      %v1494 = vshll.u32 %v1424, 16
      %v1496 = vrot.slane %v1494, 5
      %v1497 = vor.u32 %v1493, %v1496
      %v1498 = vrot.slane %v1497, 4
      %v1500 = vshll.u32 %v1425, 16
      %v1502 = vrot.slane %v1500, 5
      %v1503 = vsel %vm461, %v1498, %v1502
      %v1504 = vshrl.u32 %v1425, 16
      %v1506 = vrot.slane %v1504, 4
      %v1507 = vor.u32 %v1506, %v1502
      %v1508 = vrot.slane %v1507, 4
      %v1510 = vshll.u32 %v1426, 16
      %v1512 = vrot.slane %v1510, 5
      %v1513 = vsel %vm461, %v1508, %v1512
      %v1515 = vshrl.u32 %v1427, 16
      %v1517 = vrot.slane %v1515, 4
      %v1518 = vshll.u32 %v1427, 16
      %v1520 = vrot.slane %v1518, 5
      %v1521 = vor.u32 %v1517, %v1520
      %v1522 = vrot.slane %v1521, 4
      %v1524 = vshll.u32 %v1428, 16
      %v1526 = vrot.slane %v1524, 5
      %v1527 = vsel %vm461, %v1522, %v1526
      %v1528 = vshrl.u32 %v1428, 16
      %v1530 = vrot.slane %v1528, 4
      %v1531 = vor.u32 %v1530, %v1526
      %v1532 = vrot.slane %v1531, 4
      %v1534 = vshll.u32 %v1429, 16
      %v1536 = vrot.slane %v1534, 5
      %v1537 = vsel %vm461, %v1532, %v1536
      %v1539 = vshrl.u32 %v1430, 16
      %v1541 = vrot.slane %v1539, 4
      %v1542 = vshll.u32 %v1430, 16
      %v1544 = vrot.slane %v1542, 5
      %v1545 = vor.u32 %v1541, %v1544
      %v1546 = vrot.slane %v1545, 4
      %v1548 = vshll.u32 %v1431, 16
      %v1550 = vrot.slane %v1548, 5
      %v1551 = vsel %vm461, %v1546, %v1550
      %v1552 = vshrl.u32 %v1431, 16
      %v1554 = vrot.slane %v1552, 4
      %v1555 = vor.u32 %v1554, %v1550
      %v1556 = vrot.slane %v1555, 4
      %v1558 = vshll.u32 %v1432, 16
      %v1560 = vrot.slane %v1558, 5
      %v1561 = vsel %vm461, %v1556, %v1560
      %v1563 = vshrl.u32 %v1433, 16
      %v1565 = vrot.slane %v1563, 4
      %v1566 = vshll.u32 %v1433, 16
      %v1568 = vrot.slane %v1566, 5
      %v1569 = vor.u32 %v1565, %v1568
      %v1570 = vrot.slane %v1569, 4
      %v1572 = vshll.u32 %v1434, 16
      %v1574 = vrot.slane %v1572, 5
      %v1575 = vsel %vm461, %v1570, %v1574
      %v1576 = vshrl.u32 %v1434, 16
      %v1578 = vrot.slane %v1576, 4
      %v1579 = vor.u32 %v1578, %v1574
      %v1580 = vrot.slane %v1579, 4
      %v1582 = vshll.u32 %v1435, 16
      %v1584 = vrot.slane %v1582, 5
      %v1585 = vsel %vm461, %v1580, %v1584
      %v1587 = vshrl.u32 %v1436, 16
      %v1589 = vrot.slane %v1587, 4
      %v1590 = vshll.u32 %v1436, 16
      %v1592 = vrot.slane %v1590, 5
      %v1593 = vor.u32 %v1589, %v1592
      %v1594 = vrot.slane %v1593, 4
      %v1596 = vshll.u32 %v1437, 16
      %v1598 = vrot.slane %v1596, 5
      %v1599 = vsel %vm461, %v1594, %v1598
      %v1600 = vshrl.u32 %v1437, 16
      %v1602 = vrot.slane %v1600, 4
      %v1603 = vor.u32 %v1602, %v1598
      %v1604 = vrot.slane %v1603, 4
      %v1606 = vshll.u32 %v1438, 16
      %v1608 = vrot.slane %v1606, 5
      %v1609 = vsel %vm461, %v1604, %v1608
      %v1611 = vshrl.u32 %v1439, 16
      %v1613 = vrot.slane %v1611, 4
      %v1614 = vshll.u32 %v1439, 16
      %v1616 = vrot.slane %v1614, 5
      %v1617 = vor.u32 %v1613, %v1616
      %v1618 = vrot.slane %v1617, 4
      %v1620 = vshll.u32 %v1440, 16
      %v1622 = vrot.slane %v1620, 5
      %v1623 = vsel %vm461, %v1618, %v1622
      %v1624 = vshrl.u32 %v1440, 16
      %v1626 = vrot.slane %v1624, 4
      %v1627 = vor.u32 %v1626, %v1622
      %v1628 = vrot.slane %v1627, 4
      %v1630 = vshll.u32 %v1441, 16
      %v1632 = vrot.slane %v1630, 5
      %v1633 = vsel %vm461, %v1628, %v1632
      %s1634 = scalar_lea.vmem %s316, 8
      %v1635 = vld [vmem:[%s1634] sm:$0x3]
      %v1636 = vunpack.c.l.b16 %v1455
      %v1637 = vunpack.c.l.b16 %v1465
      %v1638 = vunpack.c.l.b16 %v1479
      %v1639 = vunpack.c.l.b16 %v1489
      %v1640 = vunpack.c.l.b16 %v1503
      %v1641 = vunpack.c.l.b16 %v1513
      %v1642 = vunpack.c.l.b16 %v1527
      %v1643 = vunpack.c.l.b16 %v1537
      %v1644 = vunpack.c.l.b16 %v1551
      %v1645 = vunpack.c.l.b16 %v1561
      %v1646 = vunpack.c.l.b16 %v1575
      %v1647 = vunpack.c.l.b16 %v1585
      %v1648 = vunpack.c.l.b16 %v1599
      %v1649 = vunpack.c.l.b16 %v1609
      %v1650 = vunpack.c.l.b16 %v1623
      %v1651 = vunpack.c.l.b16 %v1633
      %v1652 = vpack.c.b16 %v1637, %v1636
      %v1653 = vpack.c.b16 %v1639, %v1638
      %v1654 = vpack.c.b16 %v1641, %v1640
      %v1655 = vpack.c.b16 %v1643, %v1642
      %v1656 = vpack.c.b16 %v1645, %v1644
      %v1657 = vpack.c.b16 %v1647, %v1646
      %v1658 = vpack.c.b16 %v1649, %v1648
      %v1659 = vpack.c.b16 %v1651, %v1650
      %v1661 = vsel %vm680, %v1652, 0
      %v1664 = vsel %vm680, %v1653, 0
      %v1667 = vsel %vm680, %v1654, 0
      %v1670 = vsel %vm680, %v1655, 0
      %v1673 = vsel %vm680, %v1656, 0
      %v1676 = vsel %vm680, %v1657, 0
      %v1679 = vsel %vm680, %v1658, 0
      %v1682 = vsel %vm680, %v1659, 0
      %v1685 = vsel %vm705, %v1635, 0
      %1687 = vmatprep.subr.bf16.mxu0 0
      %1688 = vmatpush1.bf16.msra.mxu0 %v1685
      %1689 = vmatprep.subr.bf16.mxu0 0
      %1690 = vmatpush1.bf16.msra.mxu0 0
      %1691 = vmatprep.subr.bf16.mxu0 0
      %1692 = vmatpush1.bf16.msra.mxu0 0
      %1693 = vmatprep.subr.bf16.mxu0 0
      %1694 = vmatpush1.bf16.msra.mxu0 0
      %1695 = vmatprep.subr.bf16.mxu0 0
      %1696 = vmatpush1.bf16.msra.mxu0 0
      %1697 = vmatprep.subr.bf16.mxu0 0
      %1698 = vmatpush1.bf16.msra.mxu0 0
      %1699 = vmatprep.subr.bf16.mxu0 0
      %1700 = vmatpush1.bf16.msra.mxu0 0
      %1701 = vmatprep.subr.bf16.mxu0 0
      %1702 = vmatpush1.bf16.msra.mxu0 0
      %1703 = vmatprep.subr.bf16.mxu0 0
      %1704 = vmatpush1.bf16.msra.mxu0 0
      %1705 = vmatprep.subr.bf16.mxu0 0
      %1706 = vmatpush1.bf16.msra.mxu0 0
      %1707 = vmatprep.subr.bf16.mxu0 0
      %1708 = vmatpush1.bf16.msra.mxu0 0
      %1709 = vmatprep.subr.bf16.mxu0 0
      %1710 = vmatpush1.bf16.msra.mxu0 0
      %1711 = vmatprep.subr.bf16.mxu0 0
      %1712 = vmatpush1.bf16.msra.mxu0 0
      %1713 = vmatprep.subr.bf16.mxu0 0
      %1714 = vmatpush1.bf16.msra.mxu0 0
      %1715 = vmatprep.subr.bf16.mxu0 0
      %1716 = vmatpush1.bf16.msra.mxu0 0
      %1717 = vmatprep.subr.bf16.mxu0 0
      %1718 = vmatpush1.bf16.msra.mxu0 0
      %1719 = vmatprep.mubr.bf16.mxu0 0
      %1720 = vmatmul.mubr.bf16.gmra.mrb[0].mxu0 %v1661
      %v1721 = vpop.f32.mrb[0].mxu0
      %v1722 = vadd.f32 0.0, %v1721
      %v1723 = vpop.f32.mrb[0].mxu0
      %v1724 = vpop.f32.mrb[0].mxu0
      %v1725 = vadd.f32 0.0, %v1724
      %v1726 = vpop.f32.mrb[0].mxu0
      %1727 = vmatprep.mubr.bf16.mxu0 0
      %1728 = vmatmul.mubr.bf16.gmra.mrb[0].mxu0 %v1664
      %v1729 = vpop.f32.mrb[0].mxu0
      %v1730 = vadd.f32 0.0, %v1729
      %v1731 = vpop.f32.mrb[0].mxu0
      %v1732 = vpop.f32.mrb[0].mxu0
      %v1733 = vadd.f32 0.0, %v1732
      %v1734 = vpop.f32.mrb[0].mxu0
      %1735 = vmatprep.mubr.bf16.mxu0 0
      %1736 = vmatmul.mubr.bf16.gmra.mrb[0].mxu0 %v1667
      %v1737 = vpop.f32.mrb[0].mxu0
      %v1738 = vadd.f32 0.0, %v1737
      %v1739 = vpop.f32.mrb[0].mxu0
      %v1740 = vpop.f32.mrb[0].mxu0
      %v1741 = vadd.f32 0.0, %v1740
      %v1742 = vpop.f32.mrb[0].mxu0
      %1743 = vmatprep.mubr.bf16.mxu0 0
      %1744 = vmatmul.mubr.bf16.gmra.mrb[0].mxu0 %v1670
      %v1745 = vpop.f32.mrb[0].mxu0
      %v1746 = vadd.f32 0.0, %v1745
      %v1747 = vpop.f32.mrb[0].mxu0
      %v1748 = vpop.f32.mrb[0].mxu0
      %v1749 = vadd.f32 0.0, %v1748
      %v1750 = vpop.f32.mrb[0].mxu0
      %1751 = vmatprep.mubr.bf16.mxu0 0
      %1752 = vmatmul.mubr.bf16.gmra.mrb[0].mxu0 %v1673
      %v1753 = vpop.f32.mrb[0].mxu0
      %v1754 = vadd.f32 0.0, %v1753
      %v1755 = vpop.f32.mrb[0].mxu0
      %v1756 = vpop.f32.mrb[0].mxu0
      %v1757 = vadd.f32 0.0, %v1756
      %v1758 = vpop.f32.mrb[0].mxu0
      %1759 = vmatprep.mubr.bf16.mxu0 0
      %1760 = vmatmul.mubr.bf16.gmra.mrb[0].mxu0 %v1676
      %v1761 = vpop.f32.mrb[0].mxu0
      %v1762 = vadd.f32 0.0, %v1761
      %v1763 = vpop.f32.mrb[0].mxu0
      %v1764 = vpop.f32.mrb[0].mxu0
      %v1765 = vadd.f32 0.0, %v1764
      %v1766 = vpop.f32.mrb[0].mxu0
      %1767 = vmatprep.mubr.bf16.mxu0 0
      %1768 = vmatmul.mubr.bf16.gmra.mrb[0].mxu0 %v1679
      %v1769 = vpop.f32.mrb[0].mxu0
      %v1770 = vadd.f32 0.0, %v1769
      %v1771 = vpop.f32.mrb[0].mxu0
      %v1772 = vpop.f32.mrb[0].mxu0
      %v1773 = vadd.f32 0.0, %v1772
      %v1774 = vpop.f32.mrb[0].mxu0
      %1775 = vmatprep.mubr.bf16.mxu0 0
      %1776 = vmatmul.mubr.bf16.gmra.mrb[0].mxu0 %v1682
      %v1777 = vpop.f32.mrb[0].mxu0
      %v1778 = vadd.f32 0.0, %v1777
      %v1779 = vpop.f32.mrb[0].mxu0
      %v1780 = vpop.f32.mrb[0].mxu0
      %v1781 = vadd.f32 0.0, %v1780
      %v1782 = vpop.f32.mrb[0].mxu0
      %1783 = vdwg.mxu0
      %v1784 = vadd.f32 %v1402, %v1722
      %v1785 = vadd.f32 %v1403, %v1725
      %v1786 = vadd.f32 %v1404, %v1730
      %v1787 = vadd.f32 %v1405, %v1733
      %v1788 = vadd.f32 %v1406, %v1738
      %v1789 = vadd.f32 %v1407, %v1741
      %v1790 = vadd.f32 %v1408, %v1746
      %v1791 = vadd.f32 %v1409, %v1749
      %v1792 = vadd.f32 %v1410, %v1754
      %v1793 = vadd.f32 %v1411, %v1757
      %v1794 = vadd.f32 %v1412, %v1762
      %v1795 = vadd.f32 %v1413, %v1765
      %v1796 = vadd.f32 %v1414, %v1770
      %v1797 = vadd.f32 %v1415, %v1773
      %v1798 = vadd.f32 %v1416, %v1778
      %v1799 = vadd.f32 %v1417, %v1781
      %v1800 = vld [vmem:[%s1219] sm:$0xe]
      %v1801 = vld [vmem:[%s1219 + $0xc] sm:$0xe]
      %v1802 = vld [vmem:[%s1219 + $0x18] sm:$0xe]
      %v1803 = vld [vmem:[%s1219 + $0x24] sm:$0xe]
      %v1804 = vld [vmem:[%s1219 + $0x30] sm:$0xe]
      %v1805 = vld [vmem:[%s1219 + $0x3c] sm:$0xe]
      %v1806 = vld [vmem:[%s1219 + $0x48] sm:$0xe]
      %v1807 = vld [vmem:[%s1219 + $0x54] sm:$0xe]
      %v1832 = vrot.slane %v1800, 5
      %v1833 = vrot.slane %v1832, 4
      %v1834 = vrot.slane %v1419, 5
      %v1835 = vsel %vm996, %v1833, %v1834
      %v1836 = vrot.slane %v1834, 4
      %v1837 = vrot.slane %v1420, 5
      %v1838 = vsel %vm996, %v1836, %v1837
      %v1839 = vrot.slane %v1801, 5
      %v1840 = vrot.slane %v1839, 4
      %v1841 = vrot.slane %v1422, 5
      %v1842 = vsel %vm996, %v1840, %v1841
      %v1843 = vrot.slane %v1841, 4
      %v1844 = vrot.slane %v1423, 5
      %v1845 = vsel %vm996, %v1843, %v1844
      %v1846 = vrot.slane %v1802, 5
      %v1847 = vrot.slane %v1846, 4
      %v1848 = vrot.slane %v1425, 5
      %v1849 = vsel %vm996, %v1847, %v1848
      %v1850 = vrot.slane %v1848, 4
      %v1851 = vrot.slane %v1426, 5
      %v1852 = vsel %vm996, %v1850, %v1851
      %v1853 = vrot.slane %v1803, 5
      %v1854 = vrot.slane %v1853, 4
      %v1855 = vrot.slane %v1428, 5
      %v1856 = vsel %vm996, %v1854, %v1855
      %v1857 = vrot.slane %v1855, 4
      %v1858 = vrot.slane %v1429, 5
      %v1859 = vsel %vm996, %v1857, %v1858
      %v1860 = vrot.slane %v1804, 5
      %v1861 = vrot.slane %v1860, 4
      %v1862 = vrot.slane %v1431, 5
      %v1863 = vsel %vm996, %v1861, %v1862
      %v1864 = vrot.slane %v1862, 4
      %v1865 = vrot.slane %v1432, 5
      %v1866 = vsel %vm996, %v1864, %v1865
      %v1867 = vrot.slane %v1805, 5
      %v1868 = vrot.slane %v1867, 4
      %v1869 = vrot.slane %v1434, 5
      %v1870 = vsel %vm996, %v1868, %v1869
      %v1871 = vrot.slane %v1869, 4
      %v1872 = vrot.slane %v1435, 5
      %v1873 = vsel %vm996, %v1871, %v1872
      %v1874 = vrot.slane %v1806, 5
      %v1875 = vrot.slane %v1874, 4
      %v1876 = vrot.slane %v1437, 5
      %v1877 = vsel %vm996, %v1875, %v1876
      %v1878 = vrot.slane %v1876, 4
      %v1879 = vrot.slane %v1438, 5
      %v1880 = vsel %vm996, %v1878, %v1879
      %v1881 = vrot.slane %v1807, 5
      %v1882 = vrot.slane %v1881, 4
      %v1883 = vrot.slane %v1440, 5
      %v1884 = vsel %vm996, %v1882, %v1883
      %v1885 = vrot.slane %v1883, 4
      %v1886 = vrot.slane %v1441, 5
      %v1887 = vsel %vm996, %v1885, %v1886
      %s1888 = scalar_lea.vmem %s316, 10
      %v1889 = vld [vmem:[%s1888] sm:$0x3]
      %v1890 = vunpack.c.l.b16 %v1835
      %v1891 = vunpack.c.l.b16 %v1838
      %v1892 = vunpack.c.l.b16 %v1842
      %v1893 = vunpack.c.l.b16 %v1845
      %v1894 = vunpack.c.l.b16 %v1849
      %v1895 = vunpack.c.l.b16 %v1852
      %v1896 = vunpack.c.l.b16 %v1856
      %v1897 = vunpack.c.l.b16 %v1859
      %v1898 = vunpack.c.l.b16 %v1863
      %v1899 = vunpack.c.l.b16 %v1866
      %v1900 = vunpack.c.l.b16 %v1870
      %v1901 = vunpack.c.l.b16 %v1873
      %v1902 = vunpack.c.l.b16 %v1877
      %v1903 = vunpack.c.l.b16 %v1880
      %v1904 = vunpack.c.l.b16 %v1884
      %v1905 = vunpack.c.l.b16 %v1887
      %v1906 = vpack.c.b16 %v1891, %v1890
      %v1907 = vpack.c.b16 %v1893, %v1892
      %v1908 = vpack.c.b16 %v1895, %v1894
      %v1909 = vpack.c.b16 %v1897, %v1896
      %v1910 = vpack.c.b16 %v1899, %v1898
      %v1911 = vpack.c.b16 %v1901, %v1900
      %v1912 = vpack.c.b16 %v1903, %v1902
      %v1913 = vpack.c.b16 %v1905, %v1904
      %v1915 = vsel %vm680, %v1906, 0
      %v1918 = vsel %vm680, %v1907, 0
      %v1921 = vsel %vm680, %v1908, 0
      %v1924 = vsel %vm680, %v1909, 0
      %v1927 = vsel %vm680, %v1910, 0
      %v1930 = vsel %vm680, %v1911, 0
      %v1933 = vsel %vm680, %v1912, 0
      %v1936 = vsel %vm680, %v1913, 0
      %v1939 = vsel %vm705, %v1889, 0
      %1941 = vmatprep.subr.bf16.mxu0 0
      %1942 = vmatpush1.bf16.msra.mxu0 %v1939
      %1943 = vmatprep.subr.bf16.mxu0 0
      %1944 = vmatpush1.bf16.msra.mxu0 0
      %1945 = vmatprep.subr.bf16.mxu0 0
      %1946 = vmatpush1.bf16.msra.mxu0 0
      %1947 = vmatprep.subr.bf16.mxu0 0
      %1948 = vmatpush1.bf16.msra.mxu0 0
      %1949 = vmatprep.subr.bf16.mxu0 0
      %1950 = vmatpush1.bf16.msra.mxu0 0
      %1951 = vmatprep.subr.bf16.mxu0 0
      %1952 = vmatpush1.bf16.msra.mxu0 0
      %1953 = vmatprep.subr.bf16.mxu0 0
      %1954 = vmatpush1.bf16.msra.mxu0 0
      %1955 = vmatprep.subr.bf16.mxu0 0
      %1956 = vmatpush1.bf16.msra.mxu0 0
      %1957 = vmatprep.subr.bf16.mxu0 0
      %1958 = vmatpush1.bf16.msra.mxu0 0
      %1959 = vmatprep.subr.bf16.mxu0 0
      %1960 = vmatpush1.bf16.msra.mxu0 0
      %1961 = vmatprep.subr.bf16.mxu0 0
      %1962 = vmatpush1.bf16.msra.mxu0 0
      %1963 = vmatprep.subr.bf16.mxu0 0
      %1964 = vmatpush1.bf16.msra.mxu0 0
      %1965 = vmatprep.subr.bf16.mxu0 0
      %1966 = vmatpush1.bf16.msra.mxu0 0
      %1967 = vmatprep.subr.bf16.mxu0 0
      %1968 = vmatpush1.bf16.msra.mxu0 0
      %1969 = vmatprep.subr.bf16.mxu0 0
      %1970 = vmatpush1.bf16.msra.mxu0 0
      %1971 = vmatprep.subr.bf16.mxu0 0
      %1972 = vmatpush1.bf16.msra.mxu0 0
      %1973 = vmatprep.mubr.bf16.mxu0 0
      %1974 = vmatmul.mubr.bf16.gmra.mrb[0].mxu0 %v1915
      %v1975 = vpop.f32.mrb[0].mxu0
      %v1976 = vadd.f32 0.0, %v1975
      %v1977 = vpop.f32.mrb[0].mxu0
      %v1978 = vpop.f32.mrb[0].mxu0
      %v1979 = vadd.f32 0.0, %v1978
      %v1980 = vpop.f32.mrb[0].mxu0
      %1981 = vmatprep.mubr.bf16.mxu0 0
      %1982 = vmatmul.mubr.bf16.gmra.mrb[0].mxu0 %v1918
      %v1983 = vpop.f32.mrb[0].mxu0
      %v1984 = vadd.f32 0.0, %v1983
      %v1985 = vpop.f32.mrb[0].mxu0
      %v1986 = vpop.f32.mrb[0].mxu0
      %v1987 = vadd.f32 0.0, %v1986
      %v1988 = vpop.f32.mrb[0].mxu0
      %1989 = vmatprep.mubr.bf16.mxu0 0
      %1990 = vmatmul.mubr.bf16.gmra.mrb[0].mxu0 %v1921
      %v1991 = vpop.f32.mrb[0].mxu0
      %v1992 = vadd.f32 0.0, %v1991
      %v1993 = vpop.f32.mrb[0].mxu0
      %v1994 = vpop.f32.mrb[0].mxu0
      %v1995 = vadd.f32 0.0, %v1994
      %v1996 = vpop.f32.mrb[0].mxu0
      %1997 = vmatprep.mubr.bf16.mxu0 0
      %1998 = vmatmul.mubr.bf16.gmra.mrb[0].mxu0 %v1924
      %v1999 = vpop.f32.mrb[0].mxu0
      %v2000 = vadd.f32 0.0, %v1999
      %v2001 = vpop.f32.mrb[0].mxu0
      %v2002 = vpop.f32.mrb[0].mxu0
      %v2003 = vadd.f32 0.0, %v2002
      %v2004 = vpop.f32.mrb[0].mxu0
      %2005 = vmatprep.mubr.bf16.mxu0 0
      %2006 = vmatmul.mubr.bf16.gmra.mrb[0].mxu0 %v1927
      %v2007 = vpop.f32.mrb[0].mxu0
      %v2008 = vadd.f32 0.0, %v2007
      %v2009 = vpop.f32.mrb[0].mxu0
      %v2010 = vpop.f32.mrb[0].mxu0
      %v2011 = vadd.f32 0.0, %v2010
      %v2012 = vpop.f32.mrb[0].mxu0
      %2013 = vmatprep.mubr.bf16.mxu0 0
      %2014 = vmatmul.mubr.bf16.gmra.mrb[0].mxu0 %v1930
      %v2015 = vpop.f32.mrb[0].mxu0
      %v2016 = vadd.f32 0.0, %v2015
      %v2017 = vpop.f32.mrb[0].mxu0
      %v2018 = vpop.f32.mrb[0].mxu0
      %v2019 = vadd.f32 0.0, %v2018
      %v2020 = vpop.f32.mrb[0].mxu0
      %2021 = vmatprep.mubr.bf16.mxu0 0
      %2022 = vmatmul.mubr.bf16.gmra.mrb[0].mxu0 %v1933
      %v2023 = vpop.f32.mrb[0].mxu0
      %v2024 = vadd.f32 0.0, %v2023
      %v2025 = vpop.f32.mrb[0].mxu0
      %v2026 = vpop.f32.mrb[0].mxu0
      %v2027 = vadd.f32 0.0, %v2026
      %v2028 = vpop.f32.mrb[0].mxu0
      %2029 = vmatprep.mubr.bf16.mxu0 0
      %2030 = vmatmul.mubr.bf16.gmra.mrb[0].mxu0 %v1936
      %v2031 = vpop.f32.mrb[0].mxu0
      %v2032 = vadd.f32 0.0, %v2031
      %v2033 = vpop.f32.mrb[0].mxu0
      %v2034 = vpop.f32.mrb[0].mxu0
      %v2035 = vadd.f32 0.0, %v2034
      %v2036 = vpop.f32.mrb[0].mxu0
      %2037 = vdwg.mxu0
      %v2038 = vadd.f32 %v1784, %v1976
      %v2039 = vadd.f32 %v1785, %v1979
      %v2040 = vadd.f32 %v1786, %v1984
      %v2041 = vadd.f32 %v1787, %v1987
      %v2042 = vadd.f32 %v1788, %v1992
      %v2043 = vadd.f32 %v1789, %v1995
      %v2044 = vadd.f32 %v1790, %v2000
      %v2045 = vadd.f32 %v1791, %v2003
      %v2046 = vadd.f32 %v1792, %v2008
      %v2047 = vadd.f32 %v1793, %v2011
      %v2048 = vadd.f32 %v1794, %v2016
      %v2049 = vadd.f32 %v1795, %v2019
      %v2050 = vadd.f32 %v1796, %v2024
      %v2051 = vadd.f32 %v1797, %v2027
      %v2052 = vadd.f32 %v1798, %v2032
      %v2053 = vadd.f32 %v1799, %v2035
      %s2054 = scalar_lea.vmem [#allocation2], 24
      %v2055 = vld [vmem:[%s2054] sm:$0xf]
      %v2056 = vld [vmem:[%s2054 + $0x4] sm:$0xf]
      %v2057 = vld [vmem:[%s2054 + $0xc] sm:$0xf]
      %v2058 = vld [vmem:[%s2054 + $0x10] sm:$0xf]
      %v2059 = vld [vmem:[%s2054 + $0x18] sm:$0xf]
      %v2060 = vld [vmem:[%s2054 + $0x1c] sm:$0xf]
      %v2061 = vld [vmem:[%s2054 + $0x24] sm:$0xf]
      %v2062 = vld [vmem:[%s2054 + $0x28] sm:$0xf]
      %v2063 = vld [vmem:[%s2054 + $0x30] sm:$0xf]
      %v2064 = vld [vmem:[%s2054 + $0x34] sm:$0xf]
      %v2065 = vld [vmem:[%s2054 + $0x3c] sm:$0xf]
      %v2066 = vld [vmem:[%s2054 + $0x40] sm:$0xf]
      %v2067 = vld [vmem:[%s2054 + $0x48] sm:$0xf]
      %v2068 = vld [vmem:[%s2054 + $0x4c] sm:$0xf]
      %v2069 = vld [vmem:[%s2054 + $0x54] sm:$0xf]
      %v2070 = vld [vmem:[%s2054 + $0x58] sm:$0xf]
      %s2071 = scalar_lea.vmem %s316, 12
      %v2072 = vld [vmem:[%s2071] sm:$0x3]
      %v2089 = vunpack.c.l.b16 %v2055
      %v2090 = vunpack.c.l.b16 %v2056
      %v2091 = vunpack.c.l.b16 %v2057
      %v2092 = vunpack.c.l.b16 %v2058
      %v2093 = vunpack.c.l.b16 %v2059
      %v2094 = vunpack.c.l.b16 %v2060
      %v2095 = vunpack.c.l.b16 %v2061
      %v2096 = vunpack.c.l.b16 %v2062
      %v2097 = vunpack.c.l.b16 %v2063
      %v2098 = vunpack.c.l.b16 %v2064
      %v2099 = vunpack.c.l.b16 %v2065
      %v2100 = vunpack.c.l.b16 %v2066
      %v2101 = vunpack.c.l.b16 %v2067
      %v2102 = vunpack.c.l.b16 %v2068
      %v2103 = vunpack.c.l.b16 %v2069
      %v2104 = vunpack.c.l.b16 %v2070
      %v2105 = vpack.c.b16 %v2090, %v2089
      %v2106 = vpack.c.b16 %v2092, %v2091
      %v2107 = vpack.c.b16 %v2094, %v2093
      %v2108 = vpack.c.b16 %v2096, %v2095
      %v2109 = vpack.c.b16 %v2098, %v2097
      %v2110 = vpack.c.b16 %v2100, %v2099
      %v2111 = vpack.c.b16 %v2102, %v2101
      %v2112 = vpack.c.b16 %v2104, %v2103
      %v2114 = vsel %vm680, %v2105, 0
      %v2117 = vsel %vm680, %v2106, 0
      %v2120 = vsel %vm680, %v2107, 0
      %v2123 = vsel %vm680, %v2108, 0
      %v2126 = vsel %vm680, %v2109, 0
      %v2129 = vsel %vm680, %v2110, 0
      %v2132 = vsel %vm680, %v2111, 0
      %v2135 = vsel %vm680, %v2112, 0
      %v2138 = vsel %vm705, %v2072, 0
      %2140 = vmatprep.subr.bf16.mxu0 0
      %2141 = vmatpush1.bf16.msra.mxu0 %v2138
      %2142 = vmatprep.subr.bf16.mxu0 0
      %2143 = vmatpush1.bf16.msra.mxu0 0
      %2144 = vmatprep.subr.bf16.mxu0 0
      %2145 = vmatpush1.bf16.msra.mxu0 0
      %2146 = vmatprep.subr.bf16.mxu0 0
      %2147 = vmatpush1.bf16.msra.mxu0 0
      %2148 = vmatprep.subr.bf16.mxu0 0
      %2149 = vmatpush1.bf16.msra.mxu0 0
      %2150 = vmatprep.subr.bf16.mxu0 0
      %2151 = vmatpush1.bf16.msra.mxu0 0
      %2152 = vmatprep.subr.bf16.mxu0 0
      %2153 = vmatpush1.bf16.msra.mxu0 0
      %2154 = vmatprep.subr.bf16.mxu0 0
      %2155 = vmatpush1.bf16.msra.mxu0 0
      %2156 = vmatprep.subr.bf16.mxu0 0
      %2157 = vmatpush1.bf16.msra.mxu0 0
      %2158 = vmatprep.subr.bf16.mxu0 0
      %2159 = vmatpush1.bf16.msra.mxu0 0
      %2160 = vmatprep.subr.bf16.mxu0 0
      %2161 = vmatpush1.bf16.msra.mxu0 0
      %2162 = vmatprep.subr.bf16.mxu0 0
      %2163 = vmatpush1.bf16.msra.mxu0 0
      %2164 = vmatprep.subr.bf16.mxu0 0
      %2165 = vmatpush1.bf16.msra.mxu0 0
      %2166 = vmatprep.subr.bf16.mxu0 0
      %2167 = vmatpush1.bf16.msra.mxu0 0
      %2168 = vmatprep.subr.bf16.mxu0 0
      %2169 = vmatpush1.bf16.msra.mxu0 0
      %2170 = vmatprep.subr.bf16.mxu0 0
      %2171 = vmatpush1.bf16.msra.mxu0 0
      %2172 = vmatprep.mubr.bf16.mxu0 0
      %2173 = vmatmul.mubr.bf16.gmra.mrb[0].mxu0 %v2114
      %v2174 = vpop.f32.mrb[0].mxu0
      %v2175 = vadd.f32 0.0, %v2174
      %v2176 = vpop.f32.mrb[0].mxu0
      %v2177 = vpop.f32.mrb[0].mxu0
      %v2178 = vadd.f32 0.0, %v2177
      %v2179 = vpop.f32.mrb[0].mxu0
      %2180 = vmatprep.mubr.bf16.mxu0 0
      %2181 = vmatmul.mubr.bf16.gmra.mrb[0].mxu0 %v2117
      %v2182 = vpop.f32.mrb[0].mxu0
      %v2183 = vadd.f32 0.0, %v2182
      %v2184 = vpop.f32.mrb[0].mxu0
      %v2185 = vpop.f32.mrb[0].mxu0
      %v2186 = vadd.f32 0.0, %v2185
      %v2187 = vpop.f32.mrb[0].mxu0
      %2188 = vmatprep.mubr.bf16.mxu0 0
      %2189 = vmatmul.mubr.bf16.gmra.mrb[0].mxu0 %v2120
      %v2190 = vpop.f32.mrb[0].mxu0
      %v2191 = vadd.f32 0.0, %v2190
      %v2192 = vpop.f32.mrb[0].mxu0
      %v2193 = vpop.f32.mrb[0].mxu0
      %v2194 = vadd.f32 0.0, %v2193
      %v2195 = vpop.f32.mrb[0].mxu0
      %2196 = vmatprep.mubr.bf16.mxu0 0
      %2197 = vmatmul.mubr.bf16.gmra.mrb[0].mxu0 %v2123
      %v2198 = vpop.f32.mrb[0].mxu0
      %v2199 = vadd.f32 0.0, %v2198
      %v2200 = vpop.f32.mrb[0].mxu0
      %v2201 = vpop.f32.mrb[0].mxu0
      %v2202 = vadd.f32 0.0, %v2201
      %v2203 = vpop.f32.mrb[0].mxu0
      %2204 = vmatprep.mubr.bf16.mxu0 0
      %2205 = vmatmul.mubr.bf16.gmra.mrb[0].mxu0 %v2126
      %v2206 = vpop.f32.mrb[0].mxu0
      %v2207 = vadd.f32 0.0, %v2206
      %v2208 = vpop.f32.mrb[0].mxu0
      %v2209 = vpop.f32.mrb[0].mxu0
      %v2210 = vadd.f32 0.0, %v2209
      %v2211 = vpop.f32.mrb[0].mxu0
      %2212 = vmatprep.mubr.bf16.mxu0 0
      %2213 = vmatmul.mubr.bf16.gmra.mrb[0].mxu0 %v2129
      %v2214 = vpop.f32.mrb[0].mxu0
      %v2215 = vadd.f32 0.0, %v2214
      %v2216 = vpop.f32.mrb[0].mxu0
      %v2217 = vpop.f32.mrb[0].mxu0
      %v2218 = vadd.f32 0.0, %v2217
      %v2219 = vpop.f32.mrb[0].mxu0
      %2220 = vmatprep.mubr.bf16.mxu0 0
      %2221 = vmatmul.mubr.bf16.gmra.mrb[0].mxu0 %v2132
      %v2222 = vpop.f32.mrb[0].mxu0
      %v2223 = vadd.f32 0.0, %v2222
      %v2224 = vpop.f32.mrb[0].mxu0
      %v2225 = vpop.f32.mrb[0].mxu0
      %v2226 = vadd.f32 0.0, %v2225
      %v2227 = vpop.f32.mrb[0].mxu0
      %2228 = vmatprep.mubr.bf16.mxu0 0
      %2229 = vmatmul.mubr.bf16.gmra.mrb[0].mxu0 %v2135
      %v2230 = vpop.f32.mrb[0].mxu0
      %v2231 = vadd.f32 0.0, %v2230
      %v2232 = vpop.f32.mrb[0].mxu0
      %v2233 = vpop.f32.mrb[0].mxu0
      %v2234 = vadd.f32 0.0, %v2233
      %v2235 = vpop.f32.mrb[0].mxu0
      %2236 = vdwg.mxu0
      %v2237 = vadd.f32 %v2038, %v2175
      %v2238 = vadd.f32 %v2039, %v2178
      %v2239 = vadd.f32 %v2040, %v2183
      %v2240 = vadd.f32 %v2041, %v2186
      %v2241 = vadd.f32 %v2042, %v2191
      %v2242 = vadd.f32 %v2043, %v2194
      %v2243 = vadd.f32 %v2044, %v2199
      %v2244 = vadd.f32 %v2045, %v2202
      %v2245 = vadd.f32 %v2046, %v2207
      %v2246 = vadd.f32 %v2047, %v2210
      %v2247 = vadd.f32 %v2048, %v2215
      %v2248 = vadd.f32 %v2049, %v2218
      %v2249 = vadd.f32 %v2050, %v2223
      %v2250 = vadd.f32 %v2051, %v2226
      %v2251 = vadd.f32 %v2052, %v2231
      %v2252 = vadd.f32 %v2053, %v2234
      %v2253 = vld [vmem:[%s2054] sm:$0xf]
      %v2254 = vld [vmem:[%s2054 + $0x4] sm:$0xf]
      %v2255 = vld [vmem:[%s2054 + $0x8] sm:$0x1]
      %v2256 = vld [vmem:[%s2054 + $0xc] sm:$0xf]
      %v2257 = vld [vmem:[%s2054 + $0x10] sm:$0xf]
      %v2258 = vld [vmem:[%s2054 + $0x14] sm:$0x1]
      %v2259 = vld [vmem:[%s2054 + $0x18] sm:$0xf]
      %v2260 = vld [vmem:[%s2054 + $0x1c] sm:$0xf]
      %v2261 = vld [vmem:[%s2054 + $0x20] sm:$0x1]
      %v2262 = vld [vmem:[%s2054 + $0x24] sm:$0xf]
      %v2263 = vld [vmem:[%s2054 + $0x28] sm:$0xf]
      %v2264 = vld [vmem:[%s2054 + $0x2c] sm:$0x1]
      %v2265 = vld [vmem:[%s2054 + $0x30] sm:$0xf]
      %v2266 = vld [vmem:[%s2054 + $0x34] sm:$0xf]
      %v2267 = vld [vmem:[%s2054 + $0x38] sm:$0x1]
      %v2268 = vld [vmem:[%s2054 + $0x3c] sm:$0xf]
      %v2269 = vld [vmem:[%s2054 + $0x40] sm:$0xf]
      %v2270 = vld [vmem:[%s2054 + $0x44] sm:$0x1]
      %v2271 = vld [vmem:[%s2054 + $0x48] sm:$0xf]
      %v2272 = vld [vmem:[%s2054 + $0x4c] sm:$0xf]
      %v2273 = vld [vmem:[%s2054 + $0x50] sm:$0x1]
      %v2274 = vld [vmem:[%s2054 + $0x54] sm:$0xf]
      %v2275 = vld [vmem:[%s2054 + $0x58] sm:$0xf]
      %v2276 = vld [vmem:[%s2054 + $0x5c] sm:$0x1]
      %v2278 = vshrl.u32 %v2253, 16
      %v2280 = vrot.slane %v2278, 4
      %v2281 = vshll.u32 %v2253, 16
      %v2283 = vrot.slane %v2281, 5
      %v2284 = vor.u32 %v2280, %v2283
      %v2285 = vrot.slane %v2284, 4
      %v2287 = vshll.u32 %v2254, 16
      %v2289 = vrot.slane %v2287, 5
      %v2290 = vsel %vm461, %v2285, %v2289
      %v2291 = vshrl.u32 %v2254, 16
      %v2293 = vrot.slane %v2291, 4
      %v2294 = vor.u32 %v2293, %v2289
      %v2295 = vrot.slane %v2294, 4
      %v2297 = vshll.u32 %v2255, 16
      %v2299 = vrot.slane %v2297, 5
      %v2300 = vsel %vm461, %v2295, %v2299
      %v2302 = vshrl.u32 %v2256, 16
      %v2304 = vrot.slane %v2302, 4
      %v2305 = vshll.u32 %v2256, 16
      %v2307 = vrot.slane %v2305, 5
      %v2308 = vor.u32 %v2304, %v2307
      %v2309 = vrot.slane %v2308, 4
      %v2311 = vshll.u32 %v2257, 16
      %v2313 = vrot.slane %v2311, 5
      %v2314 = vsel %vm461, %v2309, %v2313
      %v2315 = vshrl.u32 %v2257, 16
      %v2317 = vrot.slane %v2315, 4
      %v2318 = vor.u32 %v2317, %v2313
      %v2319 = vrot.slane %v2318, 4
      %v2321 = vshll.u32 %v2258, 16
      %v2323 = vrot.slane %v2321, 5
      %v2324 = vsel %vm461, %v2319, %v2323
      %v2326 = vshrl.u32 %v2259, 16
      %v2328 = vrot.slane %v2326, 4
      %v2329 = vshll.u32 %v2259, 16
      %v2331 = vrot.slane %v2329, 5
      %v2332 = vor.u32 %v2328, %v2331
      %v2333 = vrot.slane %v2332, 4
      %v2335 = vshll.u32 %v2260, 16
      %v2337 = vrot.slane %v2335, 5
      %v2338 = vsel %vm461, %v2333, %v2337
      %v2339 = vshrl.u32 %v2260, 16
      %v2341 = vrot.slane %v2339, 4
      %v2342 = vor.u32 %v2341, %v2337
      %v2343 = vrot.slane %v2342, 4
      %v2345 = vshll.u32 %v2261, 16
      %v2347 = vrot.slane %v2345, 5
      %v2348 = vsel %vm461, %v2343, %v2347
      %v2350 = vshrl.u32 %v2262, 16
      %v2352 = vrot.slane %v2350, 4
      %v2353 = vshll.u32 %v2262, 16
      %v2355 = vrot.slane %v2353, 5
      %v2356 = vor.u32 %v2352, %v2355
      %v2357 = vrot.slane %v2356, 4
      %v2359 = vshll.u32 %v2263, 16
      %v2361 = vrot.slane %v2359, 5
      %v2362 = vsel %vm461, %v2357, %v2361
      %v2363 = vshrl.u32 %v2263, 16
      %v2365 = vrot.slane %v2363, 4
      %v2366 = vor.u32 %v2365, %v2361
      %v2367 = vrot.slane %v2366, 4
      %v2369 = vshll.u32 %v2264, 16
      %v2371 = vrot.slane %v2369, 5
      %v2372 = vsel %vm461, %v2367, %v2371
      %v2374 = vshrl.u32 %v2265, 16
      %v2376 = vrot.slane %v2374, 4
      %v2377 = vshll.u32 %v2265, 16
      %v2379 = vrot.slane %v2377, 5
      %v2380 = vor.u32 %v2376, %v2379
      %v2381 = vrot.slane %v2380, 4
      %v2383 = vshll.u32 %v2266, 16
      %v2385 = vrot.slane %v2383, 5
      %v2386 = vsel %vm461, %v2381, %v2385
      %v2387 = vshrl.u32 %v2266, 16
      %v2389 = vrot.slane %v2387, 4
      %v2390 = vor.u32 %v2389, %v2385
      %v2391 = vrot.slane %v2390, 4
      %v2393 = vshll.u32 %v2267, 16
      %v2395 = vrot.slane %v2393, 5
      %v2396 = vsel %vm461, %v2391, %v2395
      %v2398 = vshrl.u32 %v2268, 16
      %v2400 = vrot.slane %v2398, 4
      %v2401 = vshll.u32 %v2268, 16
      %v2403 = vrot.slane %v2401, 5
      %v2404 = vor.u32 %v2400, %v2403
      %v2405 = vrot.slane %v2404, 4
      %v2407 = vshll.u32 %v2269, 16
      %v2409 = vrot.slane %v2407, 5
      %v2410 = vsel %vm461, %v2405, %v2409
      %v2411 = vshrl.u32 %v2269, 16
      %v2413 = vrot.slane %v2411, 4
      %v2414 = vor.u32 %v2413, %v2409
      %v2415 = vrot.slane %v2414, 4
      %v2417 = vshll.u32 %v2270, 16
      %v2419 = vrot.slane %v2417, 5
      %v2420 = vsel %vm461, %v2415, %v2419
      %v2422 = vshrl.u32 %v2271, 16
      %v2424 = vrot.slane %v2422, 4
      %v2425 = vshll.u32 %v2271, 16
      %v2427 = vrot.slane %v2425, 5
      %v2428 = vor.u32 %v2424, %v2427
      %v2429 = vrot.slane %v2428, 4
      %v2431 = vshll.u32 %v2272, 16
      %v2433 = vrot.slane %v2431, 5
      %v2434 = vsel %vm461, %v2429, %v2433
      %v2435 = vshrl.u32 %v2272, 16
      %v2437 = vrot.slane %v2435, 4
      %v2438 = vor.u32 %v2437, %v2433
      %v2439 = vrot.slane %v2438, 4
      %v2441 = vshll.u32 %v2273, 16
      %v2443 = vrot.slane %v2441, 5
      %v2444 = vsel %vm461, %v2439, %v2443
      %v2446 = vshrl.u32 %v2274, 16
      %v2448 = vrot.slane %v2446, 4
      %v2449 = vshll.u32 %v2274, 16
      %v2451 = vrot.slane %v2449, 5
      %v2452 = vor.u32 %v2448, %v2451
      %v2453 = vrot.slane %v2452, 4
      %v2455 = vshll.u32 %v2275, 16
      %v2457 = vrot.slane %v2455, 5
      %v2458 = vsel %vm461, %v2453, %v2457
      %v2459 = vshrl.u32 %v2275, 16
      %v2461 = vrot.slane %v2459, 4
      %v2462 = vor.u32 %v2461, %v2457
      %v2463 = vrot.slane %v2462, 4
      %v2465 = vshll.u32 %v2276, 16
      %v2467 = vrot.slane %v2465, 5
      %v2468 = vsel %vm461, %v2463, %v2467
      %s2469 = scalar_lea.vmem %s316, 14
      %v2470 = vld [vmem:[%s2469] sm:$0x3]
      %v2471 = vunpack.c.l.b16 %v2290
      %v2472 = vunpack.c.l.b16 %v2300
      %v2473 = vunpack.c.l.b16 %v2314
      %v2474 = vunpack.c.l.b16 %v2324
      %v2475 = vunpack.c.l.b16 %v2338
      %v2476 = vunpack.c.l.b16 %v2348
      %v2477 = vunpack.c.l.b16 %v2362
      %v2478 = vunpack.c.l.b16 %v2372
      %v2479 = vunpack.c.l.b16 %v2386
      %v2480 = vunpack.c.l.b16 %v2396
      %v2481 = vunpack.c.l.b16 %v2410
      %v2482 = vunpack.c.l.b16 %v2420
      %v2483 = vunpack.c.l.b16 %v2434
      %v2484 = vunpack.c.l.b16 %v2444
      %v2485 = vunpack.c.l.b16 %v2458
      %v2486 = vunpack.c.l.b16 %v2468
      %v2487 = vpack.c.b16 %v2472, %v2471
      %v2488 = vpack.c.b16 %v2474, %v2473
      %v2489 = vpack.c.b16 %v2476, %v2475
      %v2490 = vpack.c.b16 %v2478, %v2477
      %v2491 = vpack.c.b16 %v2480, %v2479
      %v2492 = vpack.c.b16 %v2482, %v2481
      %v2493 = vpack.c.b16 %v2484, %v2483
      %v2494 = vpack.c.b16 %v2486, %v2485
      %v2496 = vsel %vm680, %v2487, 0
      %v2499 = vsel %vm680, %v2488, 0
      %v2502 = vsel %vm680, %v2489, 0
      %v2505 = vsel %vm680, %v2490, 0
      %v2508 = vsel %vm680, %v2491, 0
      %v2511 = vsel %vm680, %v2492, 0
      %v2514 = vsel %vm680, %v2493, 0
      %v2517 = vsel %vm680, %v2494, 0
      %v2520 = vsel %vm705, %v2470, 0
      %2522 = vmatprep.subr.bf16.mxu0 0
      %2523 = vmatpush1.bf16.msra.mxu0 %v2520
      %2524 = vmatprep.subr.bf16.mxu0 0
      %2525 = vmatpush1.bf16.msra.mxu0 0
      %2526 = vmatprep.subr.bf16.mxu0 0
      %2527 = vmatpush1.bf16.msra.mxu0 0
      %2528 = vmatprep.subr.bf16.mxu0 0
      %2529 = vmatpush1.bf16.msra.mxu0 0
      %2530 = vmatprep.subr.bf16.mxu0 0
      %2531 = vmatpush1.bf16.msra.mxu0 0
      %2532 = vmatprep.subr.bf16.mxu0 0
      %2533 = vmatpush1.bf16.msra.mxu0 0
      %2534 = vmatprep.subr.bf16.mxu0 0
      %2535 = vmatpush1.bf16.msra.mxu0 0
      %2536 = vmatprep.subr.bf16.mxu0 0
      %2537 = vmatpush1.bf16.msra.mxu0 0
      %2538 = vmatprep.subr.bf16.mxu0 0
      %2539 = vmatpush1.bf16.msra.mxu0 0
      %2540 = vmatprep.subr.bf16.mxu0 0
      %2541 = vmatpush1.bf16.msra.mxu0 0
      %2542 = vmatprep.subr.bf16.mxu0 0
      %2543 = vmatpush1.bf16.msra.mxu0 0
      %2544 = vmatprep.subr.bf16.mxu0 0
      %2545 = vmatpush1.bf16.msra.mxu0 0
      %2546 = vmatprep.subr.bf16.mxu0 0
      %2547 = vmatpush1.bf16.msra.mxu0 0
      %2548 = vmatprep.subr.bf16.mxu0 0
      %2549 = vmatpush1.bf16.msra.mxu0 0
      %2550 = vmatprep.subr.bf16.mxu0 0
      %2551 = vmatpush1.bf16.msra.mxu0 0
      %2552 = vmatprep.subr.bf16.mxu0 0
      %2553 = vmatpush1.bf16.msra.mxu0 0
      %2554 = vmatprep.mubr.bf16.mxu0 0
      %2555 = vmatmul.mubr.bf16.gmra.mrb[0].mxu0 %v2496
      %v2556 = vpop.f32.mrb[0].mxu0
      %v2557 = vadd.f32 0.0, %v2556
      %v2558 = vpop.f32.mrb[0].mxu0
      %v2559 = vpop.f32.mrb[0].mxu0
      %v2560 = vadd.f32 0.0, %v2559
      %v2561 = vpop.f32.mrb[0].mxu0
      %2562 = vmatprep.mubr.bf16.mxu0 0
      %2563 = vmatmul.mubr.bf16.gmra.mrb[0].mxu0 %v2499
      %v2564 = vpop.f32.mrb[0].mxu0
      %v2565 = vadd.f32 0.0, %v2564
      %v2566 = vpop.f32.mrb[0].mxu0
      %v2567 = vpop.f32.mrb[0].mxu0
      %v2568 = vadd.f32 0.0, %v2567
      %v2569 = vpop.f32.mrb[0].mxu0
      %2570 = vmatprep.mubr.bf16.mxu0 0
      %2571 = vmatmul.mubr.bf16.gmra.mrb[0].mxu0 %v2502
      %v2572 = vpop.f32.mrb[0].mxu0
      %v2573 = vadd.f32 0.0, %v2572
      %v2574 = vpop.f32.mrb[0].mxu0
      %v2575 = vpop.f32.mrb[0].mxu0
      %v2576 = vadd.f32 0.0, %v2575
      %v2577 = vpop.f32.mrb[0].mxu0
      %2578 = vmatprep.mubr.bf16.mxu0 0
      %2579 = vmatmul.mubr.bf16.gmra.mrb[0].mxu0 %v2505
      %v2580 = vpop.f32.mrb[0].mxu0
      %v2581 = vadd.f32 0.0, %v2580
      %v2582 = vpop.f32.mrb[0].mxu0
      %v2583 = vpop.f32.mrb[0].mxu0
      %v2584 = vadd.f32 0.0, %v2583
      %v2585 = vpop.f32.mrb[0].mxu0
      %2586 = vmatprep.mubr.bf16.mxu0 0
      %2587 = vmatmul.mubr.bf16.gmra.mrb[0].mxu0 %v2508
      %v2588 = vpop.f32.mrb[0].mxu0
      %v2589 = vadd.f32 0.0, %v2588
      %v2590 = vpop.f32.mrb[0].mxu0
      %v2591 = vpop.f32.mrb[0].mxu0
      %v2592 = vadd.f32 0.0, %v2591
      %v2593 = vpop.f32.mrb[0].mxu0
      %2594 = vmatprep.mubr.bf16.mxu0 0
      %2595 = vmatmul.mubr.bf16.gmra.mrb[0].mxu0 %v2511
      %v2596 = vpop.f32.mrb[0].mxu0
      %v2597 = vadd.f32 0.0, %v2596
      %v2598 = vpop.f32.mrb[0].mxu0
      %v2599 = vpop.f32.mrb[0].mxu0
      %v2600 = vadd.f32 0.0, %v2599
      %v2601 = vpop.f32.mrb[0].mxu0
      %2602 = vmatprep.mubr.bf16.mxu0 0
      %2603 = vmatmul.mubr.bf16.gmra.mrb[0].mxu0 %v2514
      %v2604 = vpop.f32.mrb[0].mxu0
      %v2605 = vadd.f32 0.0, %v2604
      %v2606 = vpop.f32.mrb[0].mxu0
      %v2607 = vpop.f32.mrb[0].mxu0
      %v2608 = vadd.f32 0.0, %v2607
      %v2609 = vpop.f32.mrb[0].mxu0
      %2610 = vmatprep.mubr.bf16.mxu0 0
      %2611 = vmatmul.mubr.bf16.gmra.mrb[0].mxu0 %v2517
      %v2612 = vpop.f32.mrb[0].mxu0
      %v2613 = vadd.f32 0.0, %v2612
      %v2614 = vpop.f32.mrb[0].mxu0
      %v2615 = vpop.f32.mrb[0].mxu0
      %v2616 = vadd.f32 0.0, %v2615
      %v2617 = vpop.f32.mrb[0].mxu0
      %2618 = vdwg.mxu0
      %v2619 = vadd.f32 %v2237, %v2557
      %v2620 = vadd.f32 %v2238, %v2560
      %v2621 = vadd.f32 %v2239, %v2565
      %v2622 = vadd.f32 %v2240, %v2568
      %v2623 = vadd.f32 %v2241, %v2573
      %v2624 = vadd.f32 %v2242, %v2576
      %v2625 = vadd.f32 %v2243, %v2581
      %v2626 = vadd.f32 %v2244, %v2584
      %v2627 = vadd.f32 %v2245, %v2589
      %v2628 = vadd.f32 %v2246, %v2592
      %v2629 = vadd.f32 %v2247, %v2597
      %v2630 = vadd.f32 %v2248, %v2600
      %v2631 = vadd.f32 %v2249, %v2605
      %v2632 = vadd.f32 %v2250, %v2608
      %v2633 = vadd.f32 %v2251, %v2613
      %v2634 = vadd.f32 %v2252, %v2616
      %v2635 = vld [vmem:[%s2054] sm:$0xe]
      %v2636 = vld [vmem:[%s2054 + $0xc] sm:$0xe]
      %v2637 = vld [vmem:[%s2054 + $0x18] sm:$0xe]
      %v2638 = vld [vmem:[%s2054 + $0x24] sm:$0xe]
      %v2639 = vld [vmem:[%s2054 + $0x30] sm:$0xe]
      %v2640 = vld [vmem:[%s2054 + $0x3c] sm:$0xe]
      %v2641 = vld [vmem:[%s2054 + $0x48] sm:$0xe]
      %v2642 = vld [vmem:[%s2054 + $0x54] sm:$0xe]
      %v2667 = vrot.slane %v2635, 5
      %v2668 = vrot.slane %v2667, 4
      %v2669 = vrot.slane %v2254, 5
      %v2670 = vsel %vm996, %v2668, %v2669
      %v2671 = vrot.slane %v2669, 4
      %v2672 = vrot.slane %v2255, 5
      %v2673 = vsel %vm996, %v2671, %v2672
      %v2674 = vrot.slane %v2636, 5
      %v2675 = vrot.slane %v2674, 4
      %v2676 = vrot.slane %v2257, 5
      %v2677 = vsel %vm996, %v2675, %v2676
      %v2678 = vrot.slane %v2676, 4
      %v2679 = vrot.slane %v2258, 5
      %v2680 = vsel %vm996, %v2678, %v2679
      %v2681 = vrot.slane %v2637, 5
      %v2682 = vrot.slane %v2681, 4
      %v2683 = vrot.slane %v2260, 5
      %v2684 = vsel %vm996, %v2682, %v2683
      %v2685 = vrot.slane %v2683, 4
      %v2686 = vrot.slane %v2261, 5
      %v2687 = vsel %vm996, %v2685, %v2686
      %v2688 = vrot.slane %v2638, 5
      %v2689 = vrot.slane %v2688, 4
      %v2690 = vrot.slane %v2263, 5
      %v2691 = vsel %vm996, %v2689, %v2690
      %v2692 = vrot.slane %v2690, 4
      %v2693 = vrot.slane %v2264, 5
      %v2694 = vsel %vm996, %v2692, %v2693
      %v2695 = vrot.slane %v2639, 5
      %v2696 = vrot.slane %v2695, 4
      %v2697 = vrot.slane %v2266, 5
      %v2698 = vsel %vm996, %v2696, %v2697
      %v2699 = vrot.slane %v2697, 4
      %v2700 = vrot.slane %v2267, 5
      %v2701 = vsel %vm996, %v2699, %v2700
      %v2702 = vrot.slane %v2640, 5
      %v2703 = vrot.slane %v2702, 4
      %v2704 = vrot.slane %v2269, 5
      %v2705 = vsel %vm996, %v2703, %v2704
      %v2706 = vrot.slane %v2704, 4
      %v2707 = vrot.slane %v2270, 5
      %v2708 = vsel %vm996, %v2706, %v2707
      %v2709 = vrot.slane %v2641, 5
      %v2710 = vrot.slane %v2709, 4
      %v2711 = vrot.slane %v2272, 5
      %v2712 = vsel %vm996, %v2710, %v2711
      %v2713 = vrot.slane %v2711, 4
      %v2714 = vrot.slane %v2273, 5
      %v2715 = vsel %vm996, %v2713, %v2714
      %v2716 = vrot.slane %v2642, 5
      %v2717 = vrot.slane %v2716, 4
      %v2718 = vrot.slane %v2275, 5
      %v2719 = vsel %vm996, %v2717, %v2718
      %v2720 = vrot.slane %v2718, 4
      %v2721 = vrot.slane %v2276, 5
      %v2722 = vsel %vm996, %v2720, %v2721
      %s2723 = scalar_lea.vmem %s316, 16
      %v2724 = vld [vmem:[%s2723] sm:$0x3]
      %v2725 = vunpack.c.l.b16 %v2670
      %v2726 = vunpack.c.l.b16 %v2673
      %v2727 = vunpack.c.l.b16 %v2677
      %v2728 = vunpack.c.l.b16 %v2680
      %v2729 = vunpack.c.l.b16 %v2684
      %v2730 = vunpack.c.l.b16 %v2687
      %v2731 = vunpack.c.l.b16 %v2691
      %v2732 = vunpack.c.l.b16 %v2694
      %v2733 = vunpack.c.l.b16 %v2698
      %v2734 = vunpack.c.l.b16 %v2701
      %v2735 = vunpack.c.l.b16 %v2705
      %v2736 = vunpack.c.l.b16 %v2708
      %v2737 = vunpack.c.l.b16 %v2712
      %v2738 = vunpack.c.l.b16 %v2715
      %v2739 = vunpack.c.l.b16 %v2719
      %v2740 = vunpack.c.l.b16 %v2722
      %v2741 = vpack.c.b16 %v2726, %v2725
      %v2742 = vpack.c.b16 %v2728, %v2727
      %v2743 = vpack.c.b16 %v2730, %v2729
      %v2744 = vpack.c.b16 %v2732, %v2731
      %v2745 = vpack.c.b16 %v2734, %v2733
      %v2746 = vpack.c.b16 %v2736, %v2735
      %v2747 = vpack.c.b16 %v2738, %v2737
      %v2748 = vpack.c.b16 %v2740, %v2739
      %v2750 = vsel %vm680, %v2741, 0
      %v2753 = vsel %vm680, %v2742, 0
      %v2756 = vsel %vm680, %v2743, 0
      %v2759 = vsel %vm680, %v2744, 0
      %v2762 = vsel %vm680, %v2745, 0
      %v2765 = vsel %vm680, %v2746, 0
      %v2768 = vsel %vm680, %v2747, 0
      %v2771 = vsel %vm680, %v2748, 0
      %v2774 = vsel %vm705, %v2724, 0
      %2776 = vmatprep.subr.bf16.mxu0 0
      %2777 = vmatpush1.bf16.msra.mxu0 %v2774
      %2778 = vmatprep.subr.bf16.mxu0 0
      %2779 = vmatpush1.bf16.msra.mxu0 0
      %2780 = vmatprep.subr.bf16.mxu0 0
      %2781 = vmatpush1.bf16.msra.mxu0 0
      %2782 = vmatprep.subr.bf16.mxu0 0
      %2783 = vmatpush1.bf16.msra.mxu0 0
      %2784 = vmatprep.subr.bf16.mxu0 0
      %2785 = vmatpush1.bf16.msra.mxu0 0
      %2786 = vmatprep.subr.bf16.mxu0 0
      %2787 = vmatpush1.bf16.msra.mxu0 0
      %2788 = vmatprep.subr.bf16.mxu0 0
      %2789 = vmatpush1.bf16.msra.mxu0 0
      %2790 = vmatprep.subr.bf16.mxu0 0
      %2791 = vmatpush1.bf16.msra.mxu0 0
      %2792 = vmatprep.subr.bf16.mxu0 0
      %2793 = vmatpush1.bf16.msra.mxu0 0
      %2794 = vmatprep.subr.bf16.mxu0 0
      %2795 = vmatpush1.bf16.msra.mxu0 0
      %2796 = vmatprep.subr.bf16.mxu0 0
      %2797 = vmatpush1.bf16.msra.mxu0 0
      %2798 = vmatprep.subr.bf16.mxu0 0
      %2799 = vmatpush1.bf16.msra.mxu0 0
      %2800 = vmatprep.subr.bf16.mxu0 0
      %2801 = vmatpush1.bf16.msra.mxu0 0
      %2802 = vmatprep.subr.bf16.mxu0 0
      %2803 = vmatpush1.bf16.msra.mxu0 0
      %2804 = vmatprep.subr.bf16.mxu0 0
      %2805 = vmatpush1.bf16.msra.mxu0 0
      %2806 = vmatprep.subr.bf16.mxu0 0
      %2807 = vmatpush1.bf16.msra.mxu0 0
      %2808 = vmatprep.mubr.bf16.mxu0 0
      %2809 = vmatmul.mubr.bf16.gmra.mrb[0].mxu0 %v2750
      %v2810 = vpop.f32.mrb[0].mxu0
      %v2811 = vadd.f32 0.0, %v2810
      %v2812 = vpop.f32.mrb[0].mxu0
      %v2813 = vpop.f32.mrb[0].mxu0
      %v2814 = vadd.f32 0.0, %v2813
      %v2815 = vpop.f32.mrb[0].mxu0
      %2816 = vmatprep.mubr.bf16.mxu0 0
      %2817 = vmatmul.mubr.bf16.gmra.mrb[0].mxu0 %v2753
      %v2818 = vpop.f32.mrb[0].mxu0
      %v2819 = vadd.f32 0.0, %v2818
      %v2820 = vpop.f32.mrb[0].mxu0
      %v2821 = vpop.f32.mrb[0].mxu0
      %v2822 = vadd.f32 0.0, %v2821
      %v2823 = vpop.f32.mrb[0].mxu0
      %2824 = vmatprep.mubr.bf16.mxu0 0
      %2825 = vmatmul.mubr.bf16.gmra.mrb[0].mxu0 %v2756
      %v2826 = vpop.f32.mrb[0].mxu0
      %v2827 = vadd.f32 0.0, %v2826
      %v2828 = vpop.f32.mrb[0].mxu0
      %v2829 = vpop.f32.mrb[0].mxu0
      %v2830 = vadd.f32 0.0, %v2829
      %v2831 = vpop.f32.mrb[0].mxu0
      %2832 = vmatprep.mubr.bf16.mxu0 0
      %2833 = vmatmul.mubr.bf16.gmra.mrb[0].mxu0 %v2759
      %v2834 = vpop.f32.mrb[0].mxu0
      %v2835 = vadd.f32 0.0, %v2834
      %v2836 = vpop.f32.mrb[0].mxu0
      %v2837 = vpop.f32.mrb[0].mxu0
      %v2838 = vadd.f32 0.0, %v2837
      %v2839 = vpop.f32.mrb[0].mxu0
      %2840 = vmatprep.mubr.bf16.mxu0 0
      %2841 = vmatmul.mubr.bf16.gmra.mrb[0].mxu0 %v2762
      %v2842 = vpop.f32.mrb[0].mxu0
      %v2843 = vadd.f32 0.0, %v2842
      %v2844 = vpop.f32.mrb[0].mxu0
      %v2845 = vpop.f32.mrb[0].mxu0
      %v2846 = vadd.f32 0.0, %v2845
      %v2847 = vpop.f32.mrb[0].mxu0
      %2848 = vmatprep.mubr.bf16.mxu0 0
      %2849 = vmatmul.mubr.bf16.gmra.mrb[0].mxu0 %v2765
      %v2850 = vpop.f32.mrb[0].mxu0
      %v2851 = vadd.f32 0.0, %v2850
      %v2852 = vpop.f32.mrb[0].mxu0
      %v2853 = vpop.f32.mrb[0].mxu0
      %v2854 = vadd.f32 0.0, %v2853
      %v2855 = vpop.f32.mrb[0].mxu0
      %2856 = vmatprep.mubr.bf16.mxu0 0
      %2857 = vmatmul.mubr.bf16.gmra.mrb[0].mxu0 %v2768
      %v2858 = vpop.f32.mrb[0].mxu0
      %v2859 = vadd.f32 0.0, %v2858
      %v2860 = vpop.f32.mrb[0].mxu0
      %v2861 = vpop.f32.mrb[0].mxu0
      %v2862 = vadd.f32 0.0, %v2861
      %v2863 = vpop.f32.mrb[0].mxu0
      %2864 = vmatprep.mubr.bf16.mxu0 0
      %2865 = vmatmul.mubr.bf16.gmra.mrb[0].mxu0 %v2771
      %v2866 = vpop.f32.mrb[0].mxu0
      %v2867 = vadd.f32 0.0, %v2866
      %v2868 = vpop.f32.mrb[0].mxu0
      %v2869 = vpop.f32.mrb[0].mxu0
      %v2870 = vadd.f32 0.0, %v2869
      %v2871 = vpop.f32.mrb[0].mxu0
      %2872 = vdwg.mxu0
      %v2873 = vadd.f32 %v2619, %v2811
      %v2874 = vadd.f32 %v2620, %v2814
      %v2875 = vadd.f32 %v2621, %v2819
      %v2876 = vadd.f32 %v2622, %v2822
      %v2877 = vadd.f32 %v2623, %v2827
      %v2878 = vadd.f32 %v2624, %v2830
      %v2879 = vadd.f32 %v2625, %v2835
      %v2880 = vadd.f32 %v2626, %v2838
      %v2881 = vadd.f32 %v2627, %v2843
      %v2882 = vadd.f32 %v2628, %v2846
      %v2883 = vadd.f32 %v2629, %v2851
      %v2884 = vadd.f32 %v2630, %v2854
      %v2885 = vadd.f32 %v2631, %v2859
      %v2886 = vadd.f32 %v2632, %v2862
      %v2887 = vadd.f32 %v2633, %v2867
      %v2888 = vadd.f32 %v2634, %v2870
      %v2889 = vld [vmem:[%s319] sm:$0x1]
      %v2891 = vlaneseq
      %v2892 = vshrl.u32 %v2891, 7
      %v2893 = vsub.s32 0, %v2892
      %v2894 = vrot.slane %v2889, %v2893
      %v2896 = vadd.f32 %v2873, %v2894
      %v2897 = vadd.f32 %v2874, %v2894
      %v2898 = vadd.f32 %v2875, %v2894
      %v2899 = vadd.f32 %v2876, %v2894
      %v2900 = vadd.f32 %v2877, %v2894
      %v2901 = vadd.f32 %v2878, %v2894
      %v2902 = vadd.f32 %v2879, %v2894
      %v2903 = vadd.f32 %v2880, %v2894
      %v2904 = vadd.f32 %v2881, %v2894
      %v2905 = vadd.f32 %v2882, %v2894
      %v2906 = vadd.f32 %v2883, %v2894
      %v2907 = vadd.f32 %v2884, %v2894
      %v2908 = vadd.f32 %v2885, %v2894
      %v2909 = vadd.f32 %v2886, %v2894
      %v2910 = vadd.f32 %v2887, %v2894
      %v2911 = vadd.f32 %v2888, %v2894
      %v2912 = vxor.u32 %v2896, 2147483648
      %v2913 = vxor.u32 %v2897, 2147483648
      %v2914 = vxor.u32 %v2898, 2147483648
      %v2915 = vxor.u32 %v2899, 2147483648
      %v2916 = vxor.u32 %v2900, 2147483648
      %v2917 = vxor.u32 %v2901, 2147483648
      %v2918 = vxor.u32 %v2902, 2147483648
      %v2919 = vxor.u32 %v2903, 2147483648
      %v2920 = vxor.u32 %v2904, 2147483648
      %v2921 = vxor.u32 %v2905, 2147483648
      %v2922 = vxor.u32 %v2906, 2147483648
      %v2923 = vxor.u32 %v2907, 2147483648
      %v2924 = vxor.u32 %v2908, 2147483648
      %v2925 = vxor.u32 %v2909, 2147483648
      %v2926 = vxor.u32 %v2910, 2147483648
      %v2927 = vxor.u32 %v2911, 2147483648
      %v2928 = vmul.f32 %v2912, 1.442695
      %v2929 = vpow.pop %v2928
      %v2930 = vmul.f32 %v2913, 1.442695
      %v2931 = vpow.pop %v2930
      %v2932 = vmul.f32 %v2914, 1.442695
      %v2933 = vpow.pop %v2932
      %v2934 = vmul.f32 %v2915, 1.442695
      %v2935 = vpow.pop %v2934
      %v2936 = vmul.f32 %v2916, 1.442695
      %v2937 = vpow.pop %v2936
      %v2938 = vmul.f32 %v2917, 1.442695
      %v2939 = vpow.pop %v2938
      %v2940 = vmul.f32 %v2918, 1.442695
      %v2941 = vpow.pop %v2940
      %v2942 = vmul.f32 %v2919, 1.442695
      %v2943 = vpow.pop %v2942
      %v2944 = vmul.f32 %v2920, 1.442695
      %v2945 = vpow.pop %v2944
      %v2946 = vmul.f32 %v2921, 1.442695
      %v2947 = vpow.pop %v2946
      %v2948 = vmul.f32 %v2922, 1.442695
      %v2949 = vpow.pop %v2948
      %v2950 = vmul.f32 %v2923, 1.442695
      %v2951 = vpow.pop %v2950
      %v2952 = vmul.f32 %v2924, 1.442695
      %v2953 = vpow.pop %v2952
      %v2954 = vmul.f32 %v2925, 1.442695
      %v2955 = vpow.pop %v2954
      %v2956 = vmul.f32 %v2926, 1.442695
      %v2957 = vpow.pop %v2956
      %v2958 = vmul.f32 %v2927, 1.442695
      %v2959 = vpow.pop %v2958
      %v2960 = vadd.f32 %v2929, 1.0
      %v2961 = vadd.f32 %v2931, 1.0
      %v2962 = vadd.f32 %v2933, 1.0
      %v2963 = vadd.f32 %v2935, 1.0
      %v2964 = vadd.f32 %v2937, 1.0
      %v2965 = vadd.f32 %v2939, 1.0
      %v2966 = vadd.f32 %v2941, 1.0
      %v2967 = vadd.f32 %v2943, 1.0
      %v2968 = vadd.f32 %v2945, 1.0
      %v2969 = vadd.f32 %v2947, 1.0
      %v2970 = vadd.f32 %v2949, 1.0
      %v2971 = vadd.f32 %v2951, 1.0
      %v2972 = vadd.f32 %v2953, 1.0
      %v2973 = vadd.f32 %v2955, 1.0
      %v2974 = vadd.f32 %v2957, 1.0
      %v2975 = vadd.f32 %v2959, 1.0
      %v2976 = vrcp.pop %v2960
      %v2977 = vmul.f32 1.0, %v2976
      %v2978 = vrcp.pop %v2961
      %v2979 = vmul.f32 1.0, %v2978
      %v2980 = vrcp.pop %v2962
      %v2981 = vmul.f32 1.0, %v2980
      %v2982 = vrcp.pop %v2963
      %v2983 = vmul.f32 1.0, %v2982
      %v2984 = vrcp.pop %v2964
      %v2985 = vmul.f32 1.0, %v2984
      %v2986 = vrcp.pop %v2965
      %v2987 = vmul.f32 1.0, %v2986
      %v2988 = vrcp.pop %v2966
      %v2989 = vmul.f32 1.0, %v2988
      %v2990 = vrcp.pop %v2967
      %v2991 = vmul.f32 1.0, %v2990
      %v2992 = vrcp.pop %v2968
      %v2993 = vmul.f32 1.0, %v2992
      %v2994 = vrcp.pop %v2969
      %v2995 = vmul.f32 1.0, %v2994
      %v2996 = vrcp.pop %v2970
      %v2997 = vmul.f32 1.0, %v2996
      %v2998 = vrcp.pop %v2971
      %v2999 = vmul.f32 1.0, %v2998
      %v3000 = vrcp.pop %v2972
      %v3001 = vmul.f32 1.0, %v3000
      %v3002 = vrcp.pop %v2973
      %v3003 = vmul.f32 1.0, %v3002
      %v3004 = vrcp.pop %v2974
      %v3005 = vmul.f32 1.0, %v3004
      %v3006 = vrcp.pop %v2975
      %v3007 = vmul.f32 1.0, %v3006
      %v3008 = vmul.f32 %v2896, %v2977
      %v3009 = vmul.f32 %v2897, %v2979
      %v3010 = vmul.f32 %v2898, %v2981
      %v3011 = vmul.f32 %v2899, %v2983
      %v3012 = vmul.f32 %v2900, %v2985
      %v3013 = vmul.f32 %v2901, %v2987
      %v3014 = vmul.f32 %v2902, %v2989
      %v3015 = vmul.f32 %v2903, %v2991
      %v3016 = vmul.f32 %v2904, %v2993
      %v3017 = vmul.f32 %v2905, %v2995
      %v3018 = vmul.f32 %v2906, %v2997
      %v3019 = vmul.f32 %v2907, %v2999
      %v3020 = vmul.f32 %v2908, %v3001
      %v3021 = vmul.f32 %v2909, %v3003
      %v3022 = vmul.f32 %v2910, %v3005
      %v3023 = vmul.f32 %v2911, %v3007
      %3024 = vst [vmem:[%s332] sm:$0xff] %v3008
      %3025 = vst [vmem:[%s332 + $0x8] sm:$0xff] %v3009
      %3026 = vst [vmem:[%s332 + $0x10] sm:$0xff] %v3010
      %3027 = vst [vmem:[%s332 + $0x18] sm:$0xff] %v3011
      %3028 = vst [vmem:[%s332 + $0x20] sm:$0xff] %v3012
      %3029 = vst [vmem:[%s332 + $0x28] sm:$0xff] %v3013
      %3030 = vst [vmem:[%s332 + $0x30] sm:$0xff] %v3014
      %3031 = vst [vmem:[%s332 + $0x38] sm:$0xff] %v3015
      %3032 = vst [vmem:[%s332 + $0x40] sm:$0xff] %v3016
      %3033 = vst [vmem:[%s332 + $0x48] sm:$0xff] %v3017
      %3034 = vst [vmem:[%s332 + $0x50] sm:$0xff] %v3018
      %3035 = vst [vmem:[%s332 + $0x58] sm:$0xff] %v3019
      %3036 = vst [vmem:[%s332 + $0x60] sm:$0xff] %v3020
      %3037 = vst [vmem:[%s332 + $0x68] sm:$0xff] %v3021
      %3038 = vst [vmem:[%s332 + $0x70] sm:$0xff] %v3022
      %3039 = vst [vmem:[%s332 + $0x78] sm:$0xff] %v3023
      %s3040 = smul.u32 8, %s22
      %p3041 = scmp.lt.s32.totalorder %s20, 1
      %s3042 = scalar_select %p3041, %s20, 1
      %p3043 = scmp.lt.s32.totalorder %s3040, 15
      %s3044 = scalar_select %p3043, %s3040, 15
      %p3045 = scmp.lt.s32.totalorder %s21, 0
      %s3046 = scalar_select %p3045, %s21, 0
      %s3047 = smul.addr %s3044, 2
      %s3048 = sadd.s32 %s3046, %s3047
      %s3049 = smul.addr %s3042, 32
      %s3050 = sadd.s32 %s3048, %s3049
      %s3051 = smul.addr %s3050, 8
      %s3052 = scalar_lea.vmem %s4, %s3051
      // Predicated region
      $region37: #{conv_bn_act.1} parent=35 // pred_check
        %p3053 = pneg %p166
      $region38: #{conv_bn_act.1} parent=35 // pred_check_branch
        %3055 = sbr.rel (%p3053) target = $region40
      $region39: #{conv_bn_act.1} parent=35 // pred_region
        %s3056 = smul.u32 8, %s22
      $region40: #{conv_bn_act.1} parent=35 // pred_fallthru
        _
    $region36: #{conv_bn_act.1} parent=5 // pred_fallthru
      _
    %p3057 = scmp.le.s32.totalorder 2, %s10
    // Predicated region
    $region41: #{conv_bn_act.1} parent=5 // pred_check
      %p3058 = pneg %p3057
    $region42: #{conv_bn_act.1} parent=5 // pred_check_branch
      %3060 = sbr.rel (%p3058) target = $region44
    $region43: #{conv_bn_act.1} parent=5 // pred_region
      %s3061 = ssub.s32 %s10, 2
      // Predicated region
      $region45: #{conv_bn_act.1} parent=43 // pred_check
        %p3062 = pneg %p172
      $region46: #{conv_bn_act.1} parent=43 // pred_check_branch
        %3064 = sbr.rel (%p3062) target = $region48
      $region47: #{conv_bn_act.1} parent=43 // pred_region
        %s3065 = smul.u32 8, %s25
        %p3066 = scmp.lt.s32.totalorder %s23, 1
        %s3067 = scalar_select %p3066, %s23, 1
        %p3068 = scmp.lt.s32.totalorder %s3065, 15
        %s3069 = scalar_select %p3068, %s3065, 15
        %p3070 = scmp.lt.s32.totalorder %s24, 0
        %s3071 = scalar_select %p3070, %s24, 0
        %s3072 = smul.addr %s3069, 2
        %s3073 = sadd.s32 %s3071, %s3072
        %s3074 = smul.addr %s3067, 32
        %s3075 = sadd.s32 %s3073, %s3074
        %s3076 = smul.addr %s3075, 8
        %s3077 = scalar_lea.vmem %s4, %s3076
      $region48: #{conv_bn_act.1} parent=43 // pred_fallthru
        _
    $region44: #{conv_bn_act.1} parent=5 // pred_fallthru
      _
  $region6: #{conv_bn_act.1} parent=0 // loop_footer
    %s14 = sadd.s32 1, %s10
  $region7: #{conv_bn_act.1} parent=0 // loop_footer_branch
    %9 = sbr.rel target = $region3
  $region8: #{conv_bn_act.1} parent=0 // loop_exit
    _

</llo_original>
